<compile_context>
chip_gen: v6e
topology: v6e:2x2x1
jax: 0.10.0
libtpu: 0.0.40
codegen_flags: <defaults>
</compile_context>

<pallas_src>
import functools
import math

import jax
import jax.numpy as jnp
from jax import lax
from jax.experimental import pallas as pl
from jax.experimental.pallas import tpu as pltpu

_G = 8  # guard rows around the activation slab inside each scratch buffer


# ----------------------------------------------------------------------------
# Pallas kernel
# ----------------------------------------------------------------------------
def textcnn_kernel(tok_ref, emb_ref, pe_ref, w1_ref, w2_ref, w3_ref, w4_ref,
                   sh_ref, out_ref, buf_e, buf_a, buf_b, *, D, S):
    f32 = jnp.float32
    BP = tok_ref.shape[0]            # B * P   (P = power-of-two per-batch stride)
    VP, E = emb_ref.shape            # lane-padded vocab, embedding dim
    BS = pe_ref.shape[0]             # padded batch-select width (>= B)
    B, C = out_ref.shape
    P = BP // B                      # power of two (guaranteed by the wrapper)
    H = w1_ref.shape[2]
    L = S - 1                        # conv1/2/3 output length (k=4/3/3, pad=1)
    LP = S + 1                       # conv4 output length     (k=1,     pad=1)
    G = _G

    # Row bookkeeping over the flat slab.
    row = lax.broadcasted_iota(jnp.int32, (BP, 1), 0)
    off = jnp.bitwise_and(row, P - 1)                       # offset inside batch block
    emb_win = (off >= D) & (off < D + S)                    # rows holding embeddings
    conv_win = ((off >= D) & (off < D + L)).astype(f32)     # rows holding conv outputs

    # Zero only the guard bands of the scratch buffers (the slab rows are always
    # fully overwritten by the aligned full-width stores below).
    for buf in (buf_e, buf_a, buf_b):
        zeros = jnp.zeros((G, buf.shape[1]), f32)
        buf[0:G, :] = zeros
        buf[G + BP:, :] = zeros

    # ---- embedding lookup as a one-hot MXU matmul (fused gather) + positional
    #      encoding:  `embeds += pe(embeds)`  =>  2 * emb + pe[batch].
    tok = tok_ref[...]                                      # (BP, 1); -1 on pad rows
    onehot = (tok == lax.broadcasted_iota(jnp.int32, (BP, VP), 1)).astype(f32)
    emb = jnp.dot(onehot, emb_ref[...], preferred_element_type=f32)       # (BP, E)
    bcol = lax.broadcasted_iota(jnp.int32, (BP, BS), 1)
    bsel = (((row >= bcol * P) & (row < (bcol + 1) * P)) & emb_win).astype(f32)
    pe_b = jnp.dot(bsel, pe_ref[...], preferred_element_type=f32)         # (BP, E)
    buf_e[G:G + BP, :] = 2.0 * emb + pe_b                   # zero on all pad rows

    # ---- Conv1d(pad=1) + folded BatchNorm(eval) + ReLU.  Each tap is one
    #      batched matmul over the whole (B*P, Cin) slab; pad rows are zero so
    #      `padding=1` is just "read the neighbouring row".
    def conv_bn_relu(src, w_ref, shift):
        k = w_ref.shape[0]
        acc = jnp.dot(src[G - 1:G - 1 + BP, :], w_ref[0],
                      preferred_element_type=f32)
        for t in range(1, k):                               # static unroll, k <= 4
            acc = acc + jnp.dot(src[G - 1 + t:G - 1 + t + BP, :], w_ref[t],
                                preferred_element_type=f32)
        return jnp.maximum(acc + shift, 0.0) * conv_win     # re-zero the pad rows

    h = conv_bn_relu(buf_e, w1_ref, sh_ref[0:1, :H])
    buf_a[G:G + BP, :] = h
    h = conv_bn_relu(buf_a, w2_ref, sh_ref[1:2, :H])
    buf_b[G:G + BP, :] = h
    h = conv_bn_relu(buf_b, w3_ref, sh_ref[2:3, :H])        # kept as a value

    # ---- conv4 (k=1, pad=1) + BN + ReLU.  Zero pad rows correctly produce
    #      relu(shift4), which PyTorch also includes in the mean.
    y = jnp.maximum(jnp.dot(h, w4_ref[...], preferred_element_type=f32)
                    + sh_ref[3:4, :C], 0.0)                 # (BP, C)

    # ---- mean over the LP-row window of each batch via one pooling matmul,
    #      then log_softmax and a single output store.
    col = lax.broadcasted_iota(jnp.int32, (B, BP), 1)
    brow = lax.broadcasted_iota(jnp.int32, (B, BP), 0)
    coff = jnp.bitwise_and(col, P - 1)
    pool = ((col >= brow * P) & (col < (brow + 1) * P)
            & (coff >= D - 1) & (coff < D + S)).astype(f32)
    pooled = jnp.dot(pool, y, preferred_element_type=f32) * (1.0 / LP)    # (B, C)

    m = jnp.max(pooled, axis=-1, keepdims=True)
    z = pooled - m
    lse = jnp.log(jnp.sum(jnp.exp(z), axis=-1, keepdims=True))
    out_ref[...] = z - lse


# ----------------------------------------------------------------------------
# Wrapper
# ----------------------------------------------------------------------------
def textcnn_forward(tokens, emb_table, pe_table, w1, w2, w3, w4, shifts):
    """Fused TextCNN forward.  wK: (K, Cin, Cout) with BN scale folded in,
    w4: (H, n_class), shifts: (4, max(H, n_class)) per-layer bias+BN shifts."""
    B, S = tokens.shape
    V, E = emb_table.shape
    C = w4.shape[1]
    D = _G                                  # data window starts on an 8-aligned row
    P = 1 << (D + S).bit_length()           # power-of-two per-batch stride >= D+S+1
    BP = B * P

    # Tiny layout glue: tokens in the padded slab layout, embedding table
    # lane-padded to a 128 multiple, pe rows padded to a multiple of 8.
    tokp = jnp.full((B, P), -1, jnp.int32)
    tokp = tokp.at[:, D:D + S].set(tokens.astype(jnp.int32)).reshape(BP, 1)
    VP = -(-V // 128) * 128
    embp = jnp.zeros((VP, E), jnp.float32).at[:V, :].set(emb_table)
    BS = -(-B // 8) * 8
    pep = jnp.zeros((BS, E), jnp.float32).at[:B, :].set(pe_table[:B])

    kernel = functools.partial(textcnn_kernel, D=D, S=S)
    return pl.pallas_call(
        kernel,
        out_shape=jax.ShapeDtypeStruct((B, C), jnp.float32),
        in_specs=[pl.BlockSpec(memory_space=pltpu.MemorySpace.VMEM)] * 8,
        out_specs=pl.BlockSpec(memory_space=pltpu.MemorySpace.VMEM),
        scratch_shapes=[
            pltpu.VMEM((BP + 2 * _G, E), jnp.float32),            # embedding slab
            pltpu.VMEM((BP + 2 * _G, w1.shape[2]), jnp.float32),  # conv1 output slab
            pltpu.VMEM((BP + 2 * _G, w2.shape[2]), jnp.float32),  # conv2 output slab
        ],
    )(tokp, embp, pep, w1, w2, w3, w4, shifts)


# ----------------------------------------------------------------------------
# Deterministic parameter construction + folding
# ----------------------------------------------------------------------------
def positional_encoding_rows(n_rows, d_model):
    position = jnp.arange(n_rows, dtype=jnp.float32)[:, None]
    div_term = jnp.exp(jnp.arange(0, d_model, 2, dtype=jnp.float32)
                       * (-math.log(10000.0) / d_model))
    pe = jnp.zeros((n_rows, d_model), jnp.float32)
    pe = pe.at[:, 0::2].set(jnp.sin(position * div_term))
    pe = pe.at[:, 1::2].set(jnp.cos(position * div_term))
    return pe


def conv_bn_raw(key, cin, cout, ksize):
    k1, k2, k3, k4, k5, k6 = jax.random.split(key, 6)
    fan_in = cin * ksize
    return dict(
        w=jax.random.normal(k1, (cout, cin, ksize), jnp.float32) / math.sqrt(fan_in),
        b=0.05 * jax.random.normal(k2, (cout,), jnp.float32),
        gamma=jax.random.uniform(k3, (cout,), jnp.float32, minval=0.8, maxval=1.2),
        beta=0.05 * jax.random.normal(k4, (cout,), jnp.float32),
        mean=0.05 * jax.random.normal(k5, (cout,), jnp.float32),
        var=jax.random.uniform(k6, (cout,), jnp.float32, minval=0.8, maxval=1.2))


def fold_conv_bn(raw, eps=1e-5):
    """Fold Conv1d bias + BatchNorm1d(eval) into the weights and a shift:
       BN(conv(x)) == x (*) w_folded + shift, w_folded: (K, Cin, Cout)."""
    scale = raw["gamma"] / jnp.sqrt(raw["var"] + eps)
    shift = (raw["b"] - raw["mean"]) * scale + raw["beta"]
    w_folded = jnp.transpose(raw["w"], (2, 1, 0)) * scale[None, None, :]
    return w_folded, shift


# ----------------------------------------------------------------------------
# Pure-JAX reference (unfolded params, mirrors the PyTorch module op-by-op)
# ----------------------------------------------------------------------------
def ref_forward(tokens, emb_table, pe_table, raws, eps=1e-5):
    B = tokens.shape[0]
    x = jnp.take(emb_table, tokens, axis=0)                  # embedding
    h = x + (x + pe_table[:B][:, None, :])                   # embeds += pe(embeds)
    for r in raws:
        w, b = r["w"], r["b"]                                # (Cout, Cin, K)
        k = w.shape[2]
        hp = jnp.pad(h, ((0, 0), (1, 1), (0, 0)))
        lout = hp.shape[1] - k + 1
        z = jnp.zeros((h.shape[0], lout, w.shape[0]), jnp.float32) + b
        for t in range(k):
            z = z + jnp.einsum("bld,od->blo", hp[:, t:t + lout, :], w[:, :, t])
        scale = r["gamma"] / jnp.sqrt(r["var"] + eps)
        h = jnp.maximum((z - r["mean"]) * scale + r["beta"], 0.0)
    pooled = jnp.mean(h, axis=1)                             # mean over length
    return jax.nn.log_softmax(pooled, axis=-1)


if __name__ == "__main__":
    vocab_size, embedding_dim, hidden_dim, n_class = 50, 32, 32, 8
    B, S = 2, 16

    key = jax.random.PRNGKey(0)
    k_tok, k_emb, k1, k2, k3, k4 = jax.random.split(key, 6)

    tokens = jax.random.randint(k_tok, (B, S), 0, vocab_size, dtype=jnp.int32)
    emb_table = 0.1 * jax.random.normal(k_emb, (vocab_size, embedding_dim), jnp.float32)
    pe_table = positional_encoding_rows(32, embedding_dim)   # only first B rows used

    raws = [conv_bn_raw(k1, embedding_dim, hidden_dim, 4),
            conv_bn_raw(k2, hidden_dim, hidden_dim, 3),
            conv_bn_raw(k3, hidden_dim, hidden_dim, 3),
            conv_bn_raw(k4, hidden_dim, n_class, 1)]

    # Kernel-ready folded parameters.
    (w1, s1), (w2, s2), (w3, s3), (w4f, s4) = [fold_conv_bn(r) for r in raws]
    w4 = w4f[0]                                              # k=1 conv -> (H, n_class)
    shifts = jnp.zeros((4, max(hidden_dim, n_class)), jnp.float32)
    for i, s in enumerate((s1, s2, s3, s4)):
        shifts = shifts.at[i, :s.shape[0]].set(s)

    out = textcnn_forward(tokens, emb_table, pe_table, w1, w2, w3, w4, shifts)
    out = jax.block_until_ready(out)

    ref = ref_forward(tokens, emb_table, pe_table, raws)

    assert out.shape == (B, n_class)
    assert jnp.allclose(jnp.sum(jnp.exp(out), axis=-1), 1.0, atol=1e-3)
    assert jnp.allclose(out, ref, atol=1e-2, rtol=1e-2)

    print("KERNEL_OK")
</pallas_src>

<mosaic_0001>
module attributes {stable_mosaic.version = 11 : i64} {
  func.func @textcnn_kernel(%arg0: memref<64x1xi32, #tpu.memory_space<vmem>>, %arg1: memref<128x32xf32, #tpu.memory_space<vmem>>, %arg2: memref<8x32xf32, #tpu.memory_space<vmem>>, %arg3: memref<4x32x32xf32, #tpu.memory_space<vmem>>, %arg4: memref<3x32x32xf32, #tpu.memory_space<vmem>>, %arg5: memref<3x32x32xf32, #tpu.memory_space<vmem>>, %arg6: memref<32x8xf32, #tpu.memory_space<vmem>>, %arg7: memref<4x32xf32, #tpu.memory_space<vmem>>, %arg8: memref<2x8xf32, #tpu.memory_space<vmem>>, %arg9: memref<80x32xf32, #tpu.memory_space<vmem>>, %arg10: memref<80x32xf32, #tpu.memory_space<vmem>>, %arg11: memref<80x32xf32, #tpu.memory_space<vmem>>) attributes {dimension_semantics = [], scalar_prefetch = 0 : i64, scratch_operands = 3 : i64, tpu.core_type = #tpu.core_type<tc>} {
    %0 = tpu.iota {dimensions = array<i32: 0>} : vector<64x1xi32>
    %c31_i32 = arith.constant 31 : i32
    %1 = vector.broadcast %c31_i32 : i32 to vector<64x1xi32>
    %2 = arith.andi %0, %1 : vector<64x1xi32>
    %c8_i32 = arith.constant 8 : i32
    %3 = vector.broadcast %c8_i32 : i32 to vector<64x1xi32>
    %4 = arith.cmpi sge, %2, %3 : vector<64x1xi32>
    %c24_i32 = arith.constant 24 : i32
    %5 = vector.broadcast %c24_i32 : i32 to vector<64x1xi32>
    %6 = arith.cmpi slt, %2, %5 : vector<64x1xi32>
    %7 = arith.andi %4, %6 : vector<64x1xi1>
    %c8_i32_0 = arith.constant 8 : i32
    %8 = vector.broadcast %c8_i32_0 : i32 to vector<64x1xi32>
    %9 = arith.cmpi sge, %2, %8 : vector<64x1xi32>
    %c23_i32 = arith.constant 23 : i32
    %10 = vector.broadcast %c23_i32 : i32 to vector<64x1xi32>
    %11 = arith.cmpi slt, %2, %10 : vector<64x1xi32>
    %12 = arith.andi %9, %11 : vector<64x1xi1>
    %13 = arith.extui %12 : vector<64x1xi1> to vector<64x1xi32>
    %14 = arith.sitofp %13 : vector<64x1xi32> to vector<64x1xf32>
    %cst = arith.constant 0.000000e+00 : f32
    %15 = vector.broadcast %cst : f32 to vector<8x32xf32>
    %c0 = arith.constant 0 : index
    %c0_1 = arith.constant 0 : index
    %16 = vector.load %arg9[%c0, %c0_1] : memref<80x32xf32, #tpu.memory_space<vmem>>, vector<8x32xf32>
    tpu.vector_store %arg9[%c0, %c0_1], %15 {strides = array<i32>} : memref<80x32xf32, #tpu.memory_space<vmem>>, vector<8x32xf32>,
    %c72 = arith.constant 72 : index
    %c0_2 = arith.constant 0 : index
    %17 = vector.load %arg9[%c72, %c0_2] : memref<80x32xf32, #tpu.memory_space<vmem>>, vector<8x32xf32>
    tpu.vector_store %arg9[%c72, %c0_2], %15 {strides = array<i32>} : memref<80x32xf32, #tpu.memory_space<vmem>>, vector<8x32xf32>,
    %cst_3 = arith.constant 0.000000e+00 : f32
    %18 = vector.broadcast %cst_3 : f32 to vector<8x32xf32>
    %c0_4 = arith.constant 0 : index
    %c0_5 = arith.constant 0 : index
    %19 = vector.load %arg10[%c0_4, %c0_5] : memref<80x32xf32, #tpu.memory_space<vmem>>, vector<8x32xf32>
    tpu.vector_store %arg10[%c0_4, %c0_5], %18 {strides = array<i32>} : memref<80x32xf32, #tpu.memory_space<vmem>>, vector<8x32xf32>,
    %c72_6 = arith.constant 72 : index
    %c0_7 = arith.constant 0 : index
    %20 = vector.load %arg10[%c72_6, %c0_7] : memref<80x32xf32, #tpu.memory_space<vmem>>, vector<8x32xf32>
    tpu.vector_store %arg10[%c72_6, %c0_7], %18 {strides = array<i32>} : memref<80x32xf32, #tpu.memory_space<vmem>>, vector<8x32xf32>,
    %cst_8 = arith.constant 0.000000e+00 : f32
    %21 = vector.broadcast %cst_8 : f32 to vector<8x32xf32>
    %c0_9 = arith.constant 0 : index
    %c0_10 = arith.constant 0 : index
    %22 = vector.load %arg11[%c0_9, %c0_10] : memref<80x32xf32, #tpu.memory_space<vmem>>, vector<8x32xf32>
    tpu.vector_store %arg11[%c0_9, %c0_10], %21 {strides = array<i32>} : memref<80x32xf32, #tpu.memory_space<vmem>>, vector<8x32xf32>,
    %c72_11 = arith.constant 72 : index
    %c0_12 = arith.constant 0 : index
    %23 = vector.load %arg11[%c72_11, %c0_12] : memref<80x32xf32, #tpu.memory_space<vmem>>, vector<8x32xf32>
    tpu.vector_store %arg11[%c72_11, %c0_12], %21 {strides = array<i32>} : memref<80x32xf32, #tpu.memory_space<vmem>>, vector<8x32xf32>,
    %c0_13 = arith.constant 0 : index
    %c0_14 = arith.constant 0 : index
    %24 = vector.load %arg0[%c0_13, %c0_14] : memref<64x1xi32, #tpu.memory_space<vmem>>, vector<64x1xi32>
    %25 = tpu.iota {dimensions = array<i32: 1>} : vector<64x128xi32>
    %26 = vector.broadcast %24 : vector<64x1xi32> to vector<64x128xi32>
    %27 = arith.cmpi eq, %26, %25 : vector<64x128xi32>
    %28 = arith.extui %27 : vector<64x128xi1> to vector<64x128xi32>
    %29 = arith.sitofp %28 : vector<64x128xi32> to vector<64x128xf32>
    %c0_15 = arith.constant 0 : index
    %c0_16 = arith.constant 0 : index
    %30 = vector.load %arg1[%c0_15, %c0_16] : memref<128x32xf32, #tpu.memory_space<vmem>>, vector<128x32xf32>
    %cst_17 = arith.constant dense<0.000000e+00> : vector<64x32xf32>
    %31 = tpu.matmul %29, %30, %cst_17 {dimension_numbers = #tpu.dot_dimension_numbers<[1], [0], [0], [1], [0, 0, 1, 1], [], []>} : vector<64x128xf32>, vector<128x32xf32>, vector<64x32xf32> -> vector<64x32xf32>
    %32 = tpu.iota {dimensions = array<i32: 1>} : vector<64x8xi32>
    %c32_i32 = arith.constant 32 : i32
    %33 = vector.broadcast %c32_i32 : i32 to vector<64x8xi32>
    %34 = arith.muli %32, %33 : vector<64x8xi32>
    %35 = vector.broadcast %0 : vector<64x1xi32> to vector<64x8xi32>
    %36 = arith.cmpi sge, %35, %34 : vector<64x8xi32>
    %c1_i32 = arith.constant 1 : i32
    %37 = vector.broadcast %c1_i32 : i32 to vector<64x8xi32>
    %38 = arith.addi %32, %37 : vector<64x8xi32>
    %c32_i32_18 = arith.constant 32 : i32
    %39 = vector.broadcast %c32_i32_18 : i32 to vector<64x8xi32>
    %40 = arith.muli %38, %39 : vector<64x8xi32>
    %41 = vector.broadcast %0 : vector<64x1xi32> to vector<64x8xi32>
    %42 = arith.cmpi slt, %41, %40 : vector<64x8xi32>
    %43 = arith.andi %36, %42 : vector<64x8xi1>
    %44 = vector.broadcast %7 : vector<64x1xi1> to vector<64x8xi1>
    %45 = arith.andi %43, %44 : vector<64x8xi1>
    %46 = arith.extui %45 : vector<64x8xi1> to vector<64x8xi32>
    %47 = arith.sitofp %46 : vector<64x8xi32> to vector<64x8xf32>
    %c0_19 = arith.constant 0 : index
    %c0_20 = arith.constant 0 : index
    %48 = vector.load %arg2[%c0_19, %c0_20] : memref<8x32xf32, #tpu.memory_space<vmem>>, vector<8x32xf32>
    %cst_21 = arith.constant dense<0.000000e+00> : vector<64x32xf32>
    %49 = tpu.matmul %47, %48, %cst_21 {dimension_numbers = #tpu.dot_dimension_numbers<[1], [0], [0], [1], [0, 0, 1, 1], [], []>} : vector<64x8xf32>, vector<8x32xf32>, vector<64x32xf32> -> vector<64x32xf32>
    %cst_22 = arith.constant 2.000000e+00 : f32
    %50 = vector.broadcast %cst_22 : f32 to vector<64x32xf32>
    %51 = arith.mulf %50, %31 : vector<64x32xf32>
    %52 = arith.addf %51, %49 : vector<64x32xf32>
    %c8 = arith.constant 8 : index
    %c0_23 = arith.constant 0 : index
    %53 = vector.load %arg9[%c8, %c0_23] : memref<80x32xf32, #tpu.memory_space<vmem>>, vector<64x32xf32>
    tpu.vector_store %arg9[%c8, %c0_23], %52 {strides = array<i32>} : memref<80x32xf32, #tpu.memory_space<vmem>>, vector<64x32xf32>,
    %c0_24 = arith.constant 0 : index
    %c0_25 = arith.constant 0 : index
    %54 = vector.load %arg7[%c0_24, %c0_25] : memref<4x32xf32, #tpu.memory_space<vmem>>, vector<1x32xf32>
    %c7 = arith.constant 7 : index
    %c0_26 = arith.constant 0 : index
    %55 = vector.load %arg9[%c7, %c0_26] : memref<80x32xf32, #tpu.memory_space<vmem>>, vector<64x32xf32>
    %c0_27 = arith.constant 0 : index
    %c0_28 = arith.constant 0 : index
    %c0_29 = arith.constant 0 : index
    %56 = vector.load %arg3[%c0_27, %c0_28, %c0_29] : memref<4x32x32xf32, #tpu.memory_space<vmem>>, vector<1x32x32xf32>
    %57 = vector.shape_cast %56 : vector<1x32x32xf32> to vector<32x32xf32>
    %cst_30 = arith.constant dense<0.000000e+00> : vector<64x32xf32>
    %58 = tpu.matmul %55, %57, %cst_30 {dimension_numbers = #tpu.dot_dimension_numbers<[1], [0], [0], [1], [0, 0, 1, 1], [], []>} : vector<64x32xf32>, vector<32x32xf32>, vector<64x32xf32> -> vector<64x32xf32>
    %c8_31 = arith.constant 8 : index
    %c0_32 = arith.constant 0 : index
    %59 = vector.load %arg9[%c8_31, %c0_32] : memref<80x32xf32, #tpu.memory_space<vmem>>, vector<64x32xf32>
    %c1 = arith.constant 1 : index
    %c0_33 = arith.constant 0 : index
    %c0_34 = arith.constant 0 : index
    %60 = vector.load %arg3[%c1, %c0_33, %c0_34] : memref<4x32x32xf32, #tpu.memory_space<vmem>>, vector<1x32x32xf32>
    %61 = vector.shape_cast %60 : vector<1x32x32xf32> to vector<32x32xf32>
    %cst_35 = arith.constant dense<0.000000e+00> : vector<64x32xf32>
    %62 = tpu.matmul %59, %61, %cst_35 {dimension_numbers = #tpu.dot_dimension_numbers<[1], [0], [0], [1], [0, 0, 1, 1], [], []>} : vector<64x32xf32>, vector<32x32xf32>, vector<64x32xf32> -> vector<64x32xf32>
    %63 = arith.addf %58, %62 : vector<64x32xf32>
    %c9 = arith.constant 9 : index
    %c0_36 = arith.constant 0 : index
    %64 = vector.load %arg9[%c9, %c0_36] : memref<80x32xf32, #tpu.memory_space<vmem>>, vector<64x32xf32>
    %c2 = arith.constant 2 : index
    %c0_37 = arith.constant 0 : index
    %c0_38 = arith.constant 0 : index
    %65 = vector.load %arg3[%c2, %c0_37, %c0_38] : memref<4x32x32xf32, #tpu.memory_space<vmem>>, vector<1x32x32xf32>
    %66 = vector.shape_cast %65 : vector<1x32x32xf32> to vector<32x32xf32>
    %cst_39 = arith.constant dense<0.000000e+00> : vector<64x32xf32>
    %67 = tpu.matmul %64, %66, %cst_39 {dimension_numbers = #tpu.dot_dimension_numbers<[1], [0], [0], [1], [0, 0, 1, 1], [], []>} : vector<64x32xf32>, vector<32x32xf32>, vector<64x32xf32> -> vector<64x32xf32>
    %68 = arith.addf %63, %67 : vector<64x32xf32>
    %c10 = arith.constant 10 : index
    %c0_40 = arith.constant 0 : index
    %69 = vector.load %arg9[%c10, %c0_40] : memref<80x32xf32, #tpu.memory_space<vmem>>, vector<64x32xf32>
    %c3 = arith.constant 3 : index
    %c0_41 = arith.constant 0 : index
    %c0_42 = arith.constant 0 : index
    %70 = vector.load %arg3[%c3, %c0_41, %c0_42] : memref<4x32x32xf32, #tpu.memory_space<vmem>>, vector<1x32x32xf32>
    %71 = vector.shape_cast %70 : vector<1x32x32xf32> to vector<32x32xf32>
    %cst_43 = arith.constant dense<0.000000e+00> : vector<64x32xf32>
    %72 = tpu.matmul %69, %71, %cst_43 {dimension_numbers = #tpu.dot_dimension_numbers<[1], [0], [0], [1], [0, 0, 1, 1], [], []>} : vector<64x32xf32>, vector<32x32xf32>, vector<64x32xf32> -> vector<64x32xf32>
    %73 = arith.addf %68, %72 : vector<64x32xf32>
    %74 = vector.broadcast %54 : vector<1x32xf32> to vector<64x32xf32>
    %75 = arith.addf %73, %74 : vector<64x32xf32>
    %cst_44 = arith.constant 0.000000e+00 : f32
    %76 = vector.broadcast %cst_44 : f32 to vector<64x32xf32>
    %77 = arith.maximumf %75, %76 : vector<64x32xf32>
    %78 = vector.broadcast %14 : vector<64x1xf32> to vector<64x32xf32>
    %79 = arith.mulf %77, %78 : vector<64x32xf32>
    %c8_45 = arith.constant 8 : index
    %c0_46 = arith.constant 0 : index
    %80 = vector.load %arg10[%c8_45, %c0_46] : memref<80x32xf32, #tpu.memory_space<vmem>>, vector<64x32xf32>
    tpu.vector_store %arg10[%c8_45, %c0_46], %79 {strides = array<i32>} : memref<80x32xf32, #tpu.memory_space<vmem>>, vector<64x32xf32>,
    %c1_47 = arith.constant 1 : index
    %c0_48 = arith.constant 0 : index
    %81 = vector.load %arg7[%c1_47, %c0_48] : memref<4x32xf32, #tpu.memory_space<vmem>>, vector<1x32xf32>
    %c7_49 = arith.constant 7 : index
    %c0_50 = arith.constant 0 : index
    %82 = vector.load %arg10[%c7_49, %c0_50] : memref<80x32xf32, #tpu.memory_space<vmem>>, vector<64x32xf32>
    %c0_51 = arith.constant 0 : index
    %c0_52 = arith.constant 0 : index
    %c0_53 = arith.constant 0 : index
    %83 = vector.load %arg4[%c0_51, %c0_52, %c0_53] : memref<3x32x32xf32, #tpu.memory_space<vmem>>, vector<1x32x32xf32>
    %84 = vector.shape_cast %83 : vector<1x32x32xf32> to vector<32x32xf32>
    %cst_54 = arith.constant dense<0.000000e+00> : vector<64x32xf32>
    %85 = tpu.matmul %82, %84, %cst_54 {dimension_numbers = #tpu.dot_dimension_numbers<[1], [0], [0], [1], [0, 0, 1, 1], [], []>} : vector<64x32xf32>, vector<32x32xf32>, vector<64x32xf32> -> vector<64x32xf32>
    %c8_55 = arith.constant 8 : index
    %c0_56 = arith.constant 0 : index
    %86 = vector.load %arg10[%c8_55, %c0_56] : memref<80x32xf32, #tpu.memory_space<vmem>>, vector<64x32xf32>
    %c1_57 = arith.constant 1 : index
    %c0_58 = arith.constant 0 : index
    %c0_59 = arith.constant 0 : index
    %87 = vector.load %arg4[%c1_57, %c0_58, %c0_59] : memref<3x32x32xf32, #tpu.memory_space<vmem>>, vector<1x32x32xf32>
    %88 = vector.shape_cast %87 : vector<1x32x32xf32> to vector<32x32xf32>
    %cst_60 = arith.constant dense<0.000000e+00> : vector<64x32xf32>
    %89 = tpu.matmul %86, %88, %cst_60 {dimension_numbers = #tpu.dot_dimension_numbers<[1], [0], [0], [1], [0, 0, 1, 1], [], []>} : vector<64x32xf32>, vector<32x32xf32>, vector<64x32xf32> -> vector<64x32xf32>
    %90 = arith.addf %85, %89 : vector<64x32xf32>
    %c9_61 = arith.constant 9 : index
    %c0_62 = arith.constant 0 : index
    %91 = vector.load %arg10[%c9_61, %c0_62] : memref<80x32xf32, #tpu.memory_space<vmem>>, vector<64x32xf32>
    %c2_63 = arith.constant 2 : index
    %c0_64 = arith.constant 0 : index
    %c0_65 = arith.constant 0 : index
    %92 = vector.load %arg4[%c2_63, %c0_64, %c0_65] : memref<3x32x32xf32, #tpu.memory_space<vmem>>, vector<1x32x32xf32>
    %93 = vector.shape_cast %92 : vector<1x32x32xf32> to vector<32x32xf32>
    %cst_66 = arith.constant dense<0.000000e+00> : vector<64x32xf32>
    %94 = tpu.matmul %91, %93, %cst_66 {dimension_numbers = #tpu.dot_dimension_numbers<[1], [0], [0], [1], [0, 0, 1, 1], [], []>} : vector<64x32xf32>, vector<32x32xf32>, vector<64x32xf32> -> vector<64x32xf32>
    %95 = arith.addf %90, %94 : vector<64x32xf32>
    %96 = vector.broadcast %81 : vector<1x32xf32> to vector<64x32xf32>
    %97 = arith.addf %95, %96 : vector<64x32xf32>
    %cst_67 = arith.constant 0.000000e+00 : f32
    %98 = vector.broadcast %cst_67 : f32 to vector<64x32xf32>
    %99 = arith.maximumf %97, %98 : vector<64x32xf32>
    %100 = vector.broadcast %14 : vector<64x1xf32> to vector<64x32xf32>
    %101 = arith.mulf %99, %100 : vector<64x32xf32>
    %c8_68 = arith.constant 8 : index
    %c0_69 = arith.constant 0 : index
    %102 = vector.load %arg11[%c8_68, %c0_69] : memref<80x32xf32, #tpu.memory_space<vmem>>, vector<64x32xf32>
    tpu.vector_store %arg11[%c8_68, %c0_69], %101 {strides = array<i32>} : memref<80x32xf32, #tpu.memory_space<vmem>>, vector<64x32xf32>,
    %c2_70 = arith.constant 2 : index
    %c0_71 = arith.constant 0 : index
    %103 = vector.load %arg7[%c2_70, %c0_71] : memref<4x32xf32, #tpu.memory_space<vmem>>, vector<1x32xf32>
    %c7_72 = arith.constant 7 : index
    %c0_73 = arith.constant 0 : index
    %104 = vector.load %arg11[%c7_72, %c0_73] : memref<80x32xf32, #tpu.memory_space<vmem>>, vector<64x32xf32>
    %c0_74 = arith.constant 0 : index
    %c0_75 = arith.constant 0 : index
    %c0_76 = arith.constant 0 : index
    %105 = vector.load %arg5[%c0_74, %c0_75, %c0_76] : memref<3x32x32xf32, #tpu.memory_space<vmem>>, vector<1x32x32xf32>
    %106 = vector.shape_cast %105 : vector<1x32x32xf32> to vector<32x32xf32>
    %cst_77 = arith.constant dense<0.000000e+00> : vector<64x32xf32>
    %107 = tpu.matmul %104, %106, %cst_77 {dimension_numbers = #tpu.dot_dimension_numbers<[1], [0], [0], [1], [0, 0, 1, 1], [], []>} : vector<64x32xf32>, vector<32x32xf32>, vector<64x32xf32> -> vector<64x32xf32>
    %c8_78 = arith.constant 8 : index
    %c0_79 = arith.constant 0 : index
    %108 = vector.load %arg11[%c8_78, %c0_79] : memref<80x32xf32, #tpu.memory_space<vmem>>, vector<64x32xf32>
    %c1_80 = arith.constant 1 : index
    %c0_81 = arith.constant 0 : index
    %c0_82 = arith.constant 0 : index
    %109 = vector.load %arg5[%c1_80, %c0_81, %c0_82] : memref<3x32x32xf32, #tpu.memory_space<vmem>>, vector<1x32x32xf32>
    %110 = vector.shape_cast %109 : vector<1x32x32xf32> to vector<32x32xf32>
    %cst_83 = arith.constant dense<0.000000e+00> : vector<64x32xf32>
    %111 = tpu.matmul %108, %110, %cst_83 {dimension_numbers = #tpu.dot_dimension_numbers<[1], [0], [0], [1], [0, 0, 1, 1], [], []>} : vector<64x32xf32>, vector<32x32xf32>, vector<64x32xf32> -> vector<64x32xf32>
    %112 = arith.addf %107, %111 : vector<64x32xf32>
    %c9_84 = arith.constant 9 : index
    %c0_85 = arith.constant 0 : index
    %113 = vector.load %arg11[%c9_84, %c0_85] : memref<80x32xf32, #tpu.memory_space<vmem>>, vector<64x32xf32>
    %c2_86 = arith.constant 2 : index
    %c0_87 = arith.constant 0 : index
    %c0_88 = arith.constant 0 : index
    %114 = vector.load %arg5[%c2_86, %c0_87, %c0_88] : memref<3x32x32xf32, #tpu.memory_space<vmem>>, vector<1x32x32xf32>
    %115 = vector.shape_cast %114 : vector<1x32x32xf32> to vector<32x32xf32>
    %cst_89 = arith.constant dense<0.000000e+00> : vector<64x32xf32>
    %116 = tpu.matmul %113, %115, %cst_89 {dimension_numbers = #tpu.dot_dimension_numbers<[1], [0], [0], [1], [0, 0, 1, 1], [], []>} : vector<64x32xf32>, vector<32x32xf32>, vector<64x32xf32> -> vector<64x32xf32>
    %117 = arith.addf %112, %116 : vector<64x32xf32>
    %118 = vector.broadcast %103 : vector<1x32xf32> to vector<64x32xf32>
    %119 = arith.addf %117, %118 : vector<64x32xf32>
    %cst_90 = arith.constant 0.000000e+00 : f32
    %120 = vector.broadcast %cst_90 : f32 to vector<64x32xf32>
    %121 = arith.maximumf %119, %120 : vector<64x32xf32>
    %122 = vector.broadcast %14 : vector<64x1xf32> to vector<64x32xf32>
    %123 = arith.mulf %121, %122 : vector<64x32xf32>
    %c0_91 = arith.constant 0 : index
    %c0_92 = arith.constant 0 : index
    %124 = vector.load %arg6[%c0_91, %c0_92] : memref<32x8xf32, #tpu.memory_space<vmem>>, vector<32x8xf32>
    %cst_93 = arith.constant dense<0.000000e+00> : vector<64x8xf32>
    %125 = tpu.matmul %123, %124, %cst_93 {dimension_numbers = #tpu.dot_dimension_numbers<[1], [0], [0], [1], [0, 0, 1, 1], [], []>} : vector<64x32xf32>, vector<32x8xf32>, vector<64x8xf32> -> vector<64x8xf32>
    %c3_94 = arith.constant 3 : index
    %c0_95 = arith.constant 0 : index
    %126 = vector.load %arg7[%c3_94, %c0_95] : memref<4x32xf32, #tpu.memory_space<vmem>>, vector<1x8xf32>
    %127 = vector.broadcast %126 : vector<1x8xf32> to vector<64x8xf32>
    %128 = arith.addf %125, %127 : vector<64x8xf32>
    %cst_96 = arith.constant 0.000000e+00 : f32
    %129 = vector.broadcast %cst_96 : f32 to vector<64x8xf32>
    %130 = arith.maximumf %128, %129 : vector<64x8xf32>
    %131 = tpu.iota {dimensions = array<i32: 1>} : vector<2x64xi32>
    %132 = tpu.iota {dimensions = array<i32: 0>} : vector<2x64xi32>
    %c31_i32_97 = arith.constant 31 : i32
    %133 = vector.broadcast %c31_i32_97 : i32 to vector<2x64xi32>
    %134 = arith.andi %131, %133 : vector<2x64xi32>
    %c32_i32_98 = arith.constant 32 : i32
    %135 = vector.broadcast %c32_i32_98 : i32 to vector<2x64xi32>
    %136 = arith.muli %132, %135 : vector<2x64xi32>
    %137 = arith.cmpi sge, %131, %136 : vector<2x64xi32>
    %c1_i32_99 = arith.constant 1 : i32
    %138 = vector.broadcast %c1_i32_99 : i32 to vector<2x64xi32>
    %139 = arith.addi %132, %138 : vector<2x64xi32>
    %c32_i32_100 = arith.constant 32 : i32
    %140 = vector.broadcast %c32_i32_100 : i32 to vector<2x64xi32>
    %141 = arith.muli %139, %140 : vector<2x64xi32>
    %142 = arith.cmpi slt, %131, %141 : vector<2x64xi32>
    %143 = arith.andi %137, %142 : vector<2x64xi1>
    %c7_i32 = arith.constant 7 : i32
    %144 = vector.broadcast %c7_i32 : i32 to vector<2x64xi32>
    %145 = arith.cmpi sge, %134, %144 : vector<2x64xi32>
    %146 = arith.andi %143, %145 : vector<2x64xi1>
    %c24_i32_101 = arith.constant 24 : i32
    %147 = vector.broadcast %c24_i32_101 : i32 to vector<2x64xi32>
    %148 = arith.cmpi slt, %134, %147 : vector<2x64xi32>
    %149 = arith.andi %146, %148 : vector<2x64xi1>
    %150 = arith.extui %149 : vector<2x64xi1> to vector<2x64xi32>
    %151 = arith.sitofp %150 : vector<2x64xi32> to vector<2x64xf32>
    %cst_102 = arith.constant dense<0.000000e+00> : vector<2x8xf32>
    %152 = tpu.matmul %151, %130, %cst_102 {dimension_numbers = #tpu.dot_dimension_numbers<[1], [0], [0], [1], [0, 0, 1, 1], [], []>} : vector<2x64xf32>, vector<64x8xf32>, vector<2x8xf32> -> vector<2x8xf32>
    %cst_103 = arith.constant 0.0588235296 : f32
    %153 = vector.broadcast %cst_103 : f32 to vector<2x8xf32>
    %154 = arith.mulf %152, %153 : vector<2x8xf32>
    %cst_104 = arith.constant dense<0xFF800000> : vector<2xf32>
    %155 = vector.multi_reduction <maximumf>, %154, %cst_104 [1] : vector<2x8xf32> to vector<2xf32>
    %156 = vector.shape_cast %155 : vector<2xf32> to vector<2x1xf32>
    %157 = vector.broadcast %156 : vector<2x1xf32> to vector<2x8xf32>
    %158 = arith.subf %154, %157 : vector<2x8xf32>
    %159 = math.exp %158 : vector<2x8xf32>
    %cst_105 = arith.constant dense<0.000000e+00> : vector<2xf32>
    %160 = vector.multi_reduction <add>, %159, %cst_105 [1] : vector<2x8xf32> to vector<2xf32>
    %161 = vector.shape_cast %160 : vector<2xf32> to vector<2x1xf32>
    %162 = math.log %161 : vector<2x1xf32>
    %163 = vector.broadcast %162 : vector<2x1xf32> to vector<2x8xf32>
    %164 = arith.subf %158, %163 : vector<2x8xf32>
    %c0_106 = arith.constant 0 : index
    %c0_107 = arith.constant 0 : index
    %165 = vector.load %arg8[%c0_106, %c0_107] : memref<2x8xf32, #tpu.memory_space<vmem>>, vector<2x8xf32>
    tpu.vector_store %arg8[%c0_106, %c0_107], %164 {strides = array<i32>} : memref<2x8xf32, #tpu.memory_space<vmem>>, vector<2x8xf32>,
    return
  }
}

</mosaic_0001>

<llo_original>
// kernel: tpu_custom_call.1
$region0: #{tpu_custom_call.1}
  #allocation0 [shape = 'u32[]', space=smem, size = 0x4, offset = 0x4, fixed_abs, tag = 'smem constant byte address 0x4 - core index']
  #allocation1 [shape = 'u32[144,128]{1,0:T(1,128)}', space=vmem, size = 0x12000, scoped, tag = 'internal scratch']
  #allocation2 [shape = 'f32[80,32]{1,0:T(8,128)}', space=vmem, size = 0xa000, scoped, tag = 'scratch operand']
  #allocation3 [shape = 'f32[80,32]{1,0:T(8,128)}', space=vmem, size = 0xa000, scoped, tag = 'scratch operand']
  #allocation4 [shape = 'f32[80,32]{1,0:T(8,128)}', space=vmem, size = 0xa000, scoped, tag = 'scratch operand']
  %s0 = inlined_call_operand.vmem [shape: s32[64,1], index: 0, kind: input, shape index: {}]
  %s1 = inlined_call_operand.vmem [shape: f32[128,32], index: 1, kind: input, shape index: {}]
  %s2 = inlined_call_operand.vmem [shape: f32[8,32], index: 2, kind: input, shape index: {}]
  %s3 = inlined_call_operand.vmem [shape: f32[4,32,32], index: 3, kind: input, shape index: {}]
  %s4 = inlined_call_operand.vmem [shape: f32[3,32,32], index: 4, kind: input, shape index: {}]
  %s5 = inlined_call_operand.hbm [shape: f32[3,32,32], index: 5, kind: input, shape index: {}]
  %s6 = inlined_call_operand.vmem [shape: f32[32,8], index: 6, kind: input, shape index: {}]
  %s7 = inlined_call_operand.hbm [shape: f32[4,32], index: 7, kind: input, shape index: {}]
  %s8 = inlined_call_operand.hbm [shape: f32[2,8], index: 8, kind: output, shape index: {}]
  %s9 = sld [smem:[#allocation0]]
  $region50: #{tpu_custom_call.1} parent=0
    _
  %s11 = ssub.s32 1, %s9
  %s12 = scalar_select 0, %s11, %s9
  $region1: #{tpu_custom_call.1} parent=0
    #allocation5 [shape = 'u8[49152]{0}', space=vmem, size = 0xc000, scoped, tag = 'input window, operand 5, single buffered']
    #allocation6 [shape = 's32[1]{0}', space=sflag, size = 0x4, scoped, tag = 'scoped memory for tpu_custom_call.1']
    #allocation7 [shape = 's32[1]{0}', space=sflag, size = 0x4, scoped, tag = 'scoped memory for tpu_custom_call.1']
    #allocation8 [shape = 'u8[2048]{0}', space=vmem, size = 0x800, scoped, tag = 'input window, operand 7, single buffered']
    #allocation9 [shape = 's32[1]{0}', space=sflag, size = 0x4, scoped, tag = 'scoped memory for tpu_custom_call.1']
    #allocation10 [shape = 'u8[1024]{0}', space=vmem, size = 0x400, scoped, tag = 'output window, operand 0, single buffered']
    %13 = vsyncpa [#allocation6], 0
    %14 = vsyncpa [#allocation9], 0
    %15 = vsyncpa [#allocation7], 0
    // Predicated region
    $region2: #{tpu_custom_call.1} parent=1 // pred_check
      _
    $region3: #{tpu_custom_call.1} parent=1 // pred_check_branch
      %17 = sbr.rel (0) target = $region5
    $region4: #{tpu_custom_call.1} parent=1 // pred_region
      _
    $region5: #{tpu_custom_call.1} parent=1 // pred_fallthru
      _
    // Predicated region
    $region6: #{tpu_custom_call.1} parent=1 // pred_check
      _
    $region7: #{tpu_custom_call.1} parent=1 // pred_check_branch
      %19 = sbr.rel (0) target = $region9
    $region8: #{tpu_custom_call.1} parent=1 // pred_region
      _
    $region9: #{tpu_custom_call.1} parent=1 // pred_fallthru
      _
    // Predicated region
    $region10: #{tpu_custom_call.1} parent=1 // pred_check
      _
    $region11: #{tpu_custom_call.1} parent=1 // pred_check_branch
      %21 = sbr.rel (0) target = $region13
    $region12: #{tpu_custom_call.1} parent=1 // pred_region
      _
    $region13: #{tpu_custom_call.1} parent=1 // pred_fallthru
      _
    // Predicated region
    $region14: #{tpu_custom_call.1} parent=1 // pred_check
      _
    $region15: #{tpu_custom_call.1} parent=1 // pred_check_branch
      %23 = sbr.rel (0) target = $region17
    $region16: #{tpu_custom_call.1} parent=1 // pred_region
      _
    $region17: #{tpu_custom_call.1} parent=1 // pred_fallthru
      _
    // Predicated region
    $region18: #{tpu_custom_call.1} parent=1 // pred_check
      _
    $region19: #{tpu_custom_call.1} parent=1 // pred_check_branch
      %25 = sbr.rel (0) target = $region21
    $region20: #{tpu_custom_call.1} parent=1 // pred_region
      _
    $region21: #{tpu_custom_call.1} parent=1 // pred_fallthru
      _
    // Predicated region
    $region22: #{tpu_custom_call.1} parent=1 // pred_check
      _
    $region23: #{tpu_custom_call.1} parent=1 // pred_check_branch
      %27 = sbr.rel (0) target = $region25
    $region24: #{tpu_custom_call.1} parent=1 // pred_region
      %s29 = ssub.s32 1536, 1536
      %30 = vsyncadd [#allocation6], %s29
      %s31 = sshll.u32 [#allocation5], 4
      %s32 = int_to_ptr.vmem [resolvable:$true] %s31
      %37 = dma.hbm_to_vmem [thread:$0]  %s5, 1536, %s32, [#allocation6], 128, 128, 8
    $region25: #{tpu_custom_call.1} parent=1 // pred_fallthru
      _
    // Predicated region
    $region26: #{tpu_custom_call.1} parent=1 // pred_check
      _
    $region27: #{tpu_custom_call.1} parent=1 // pred_check_branch
      %39 = sbr.rel (0) target = $region29
    $region28: #{tpu_custom_call.1} parent=1 // pred_region
      _
    $region29: #{tpu_custom_call.1} parent=1 // pred_fallthru
      _
    // Predicated region
    $region30: #{tpu_custom_call.1} parent=1 // pred_check
      _
    $region31: #{tpu_custom_call.1} parent=1 // pred_check_branch
      %41 = sbr.rel (0) target = $region33
    $region32: #{tpu_custom_call.1} parent=1 // pred_region
      %s43 = ssub.s32 64, 64
      %44 = vsyncadd [#allocation9], %s43
      %s46 = sshll.u32 [#allocation8], 4
      %s47 = int_to_ptr.vmem [resolvable:$true] %s46
      %49 = dma.hbm_to_vmem [thread:$0]  %s7, 64, %s47, [#allocation9]
    $region33: #{tpu_custom_call.1} parent=1 // pred_fallthru
      _
    // Predicated region
    $region34: #{tpu_custom_call.1} parent=1 // pred_check
      _
    $region35: #{tpu_custom_call.1} parent=1 // pred_check_branch
      %51 = sbr.rel (0) target = $region37
    $region36: #{tpu_custom_call.1} parent=1 // pred_region
      %52 = dma.done [#allocation6], 1536
    $region37: #{tpu_custom_call.1} parent=1 // pred_fallthru
      _
    // Predicated region
    $region38: #{tpu_custom_call.1} parent=1 // pred_check
      _
    $region39: #{tpu_custom_call.1} parent=1 // pred_check_branch
      %54 = sbr.rel (0) target = $region41
    $region40: #{tpu_custom_call.1} parent=1 // pred_region
      %55 = dma.done [#allocation9], 64
    $region41: #{tpu_custom_call.1} parent=1 // pred_fallthru
      _
    %v56 = vlaneseq
    %v57 = vshrl.u32 %v56, 7
    %v58 = vadd.s32 %v57, 8
    %v59 = vadd.s32 %v57, 16
    %v60 = vadd.s32 %v57, 24
    %v61 = vadd.s32 %v57, 32
    %v62 = vadd.s32 %v57, 40
    %v63 = vadd.s32 %v57, 48
    %v64 = vadd.s32 %v57, 56
    %v65 = vand.u32 %v57, 31
    %v66 = vand.u32 %v58, 31
    %v67 = vand.u32 %v59, 31
    %v68 = vand.u32 %v60, 31
    %v69 = vand.u32 %v61, 31
    %v70 = vand.u32 %v62, 31
    %v71 = vand.u32 %v63, 31
    %v72 = vand.u32 %v64, 31
    %vm73 = vcmp.ge.s32.totalorder %v65, 8
    %vm74 = vcmp.ge.s32.totalorder %v66, 8
    %vm75 = vcmp.ge.s32.totalorder %v67, 8
    %vm76 = vcmp.ge.s32.totalorder %v68, 8
    %vm77 = vcmp.ge.s32.totalorder %v69, 8
    %vm78 = vcmp.ge.s32.totalorder %v70, 8
    %vm79 = vcmp.ge.s32.totalorder %v71, 8
    %vm80 = vcmp.ge.s32.totalorder %v72, 8
    %vm81 = vcmp.lt.s32.totalorder %v65, 24
    %vm82 = vcmp.lt.s32.totalorder %v66, 24
    %vm83 = vcmp.lt.s32.totalorder %v67, 24
    %vm84 = vcmp.lt.s32.totalorder %v68, 24
    %vm85 = vcmp.lt.s32.totalorder %v69, 24
    %vm86 = vcmp.lt.s32.totalorder %v70, 24
    %vm87 = vcmp.lt.s32.totalorder %v71, 24
    %vm88 = vcmp.lt.s32.totalorder %v72, 24
    %vm89 = vmand %vm73, %vm81
    %vm90 = vmand %vm74, %vm82
    %vm91 = vmand %vm75, %vm83
    %vm92 = vmand %vm76, %vm84
    %vm93 = vmand %vm77, %vm85
    %vm94 = vmand %vm78, %vm86
    %vm95 = vmand %vm79, %vm87
    %vm96 = vmand %vm80, %vm88
    %vm97 = vcmp.lt.s32.totalorder %v65, 23
    %vm98 = vcmp.lt.s32.totalorder %v66, 23
    %vm99 = vcmp.lt.s32.totalorder %v67, 23
    %vm100 = vcmp.lt.s32.totalorder %v68, 23
    %vm101 = vcmp.lt.s32.totalorder %v69, 23
    %vm102 = vcmp.lt.s32.totalorder %v70, 23
    %vm103 = vcmp.lt.s32.totalorder %v71, 23
    %vm104 = vcmp.lt.s32.totalorder %v72, 23
    %vm105 = vmand %vm73, %vm97
    %vm106 = vmand %vm74, %vm98
    %vm107 = vmand %vm75, %vm99
    %vm108 = vmand %vm76, %vm100
    %vm109 = vmand %vm77, %vm101
    %vm110 = vmand %vm78, %vm102
    %vm111 = vmand %vm79, %vm103
    %vm112 = vmand %vm80, %vm104
    %v113 = vsel %vm105, 1, 0
    %v114 = vsel %vm106, 1, 0
    %v115 = vsel %vm107, 1, 0
    %v116 = vsel %vm108, 1, 0
    %v117 = vsel %vm109, 1, 0
    %v118 = vsel %vm110, 1, 0
    %v119 = vsel %vm111, 1, 0
    %v120 = vsel %vm112, 1, 0
    %v121 = vcvt.s32.f32 %v113
    %v122 = vcvt.s32.f32 %v114
    %v123 = vcvt.s32.f32 %v115
    %v124 = vcvt.s32.f32 %v116
    %v125 = vcvt.s32.f32 %v117
    %v126 = vcvt.s32.f32 %v118
    %v127 = vcvt.s32.f32 %v119
    %v128 = vcvt.s32.f32 %v120
    %vm129 = vcmask 261120
    %130 = vst.msk [vmem:[#allocation2] sm:$0xff] %vm129, 0.0
    %131 = vst.msk [vmem:[#allocation2 + $0x48] sm:$0xff] %vm129, 0.0
    %132 = vst.msk [vmem:[#allocation3] sm:$0xff] %vm129, 0.0
    %133 = vst.msk [vmem:[#allocation3 + $0x48] sm:$0xff] %vm129, 0.0
    %134 = vst.msk [vmem:[#allocation4] sm:$0xff] %vm129, 0.0
    %135 = vst.msk [vmem:[#allocation4 + $0x48] sm:$0xff] %vm129, 0.0
    %v136 = vld [vmem:[%s0] sm:$0xff]
    %v137 = vld [vmem:[%s0 + $0x8] sm:$0xff]
    %v138 = vld [vmem:[%s0 + $0x10] sm:$0xff]
    %v139 = vld [vmem:[%s0 + $0x18] sm:$0xff]
    %v140 = vld [vmem:[%s0 + $0x20] sm:$0xff]
    %v141 = vld [vmem:[%s0 + $0x28] sm:$0xff]
    %v142 = vld [vmem:[%s0 + $0x30] sm:$0xff]
    %v143 = vld [vmem:[%s0 + $0x38] sm:$0xff]
    %v144 = vlaneseq
    %v145 = vand.u32 %v144, 127
    %146 = vset.pattern.permute.xlu0 0
    %147 = vperm.xlu0 %146, %v136
    %v148 = vpop.permute.xlu0 %147
    %149 = vset.pattern.permute.xlu0 0
    %150 = vperm.xlu0 %149, %v137
    %v151 = vpop.permute.xlu0 %150
    %152 = vset.pattern.permute.xlu0 0
    %153 = vperm.xlu0 %152, %v138
    %v154 = vpop.permute.xlu0 %153
    %155 = vset.pattern.permute.xlu0 0
    %156 = vperm.xlu0 %155, %v139
    %v157 = vpop.permute.xlu0 %156
    %158 = vset.pattern.permute.xlu0 0
    %159 = vperm.xlu0 %158, %v140
    %v160 = vpop.permute.xlu0 %159
    %161 = vset.pattern.permute.xlu0 0
    %162 = vperm.xlu0 %161, %v141
    %v163 = vpop.permute.xlu0 %162
    %164 = vset.pattern.permute.xlu0 0
    %165 = vperm.xlu0 %164, %v142
    %v166 = vpop.permute.xlu0 %165
    %167 = vset.pattern.permute.xlu0 0
    %168 = vperm.xlu0 %167, %v143
    %v169 = vpop.permute.xlu0 %168
    %vm170 = vcmp.eq.s32.totalorder %v148, %v145
    %vm171 = vcmp.eq.s32.totalorder %v151, %v145
    %vm172 = vcmp.eq.s32.totalorder %v154, %v145
    %vm173 = vcmp.eq.s32.totalorder %v157, %v145
    %vm174 = vcmp.eq.s32.totalorder %v160, %v145
    %vm175 = vcmp.eq.s32.totalorder %v163, %v145
    %vm176 = vcmp.eq.s32.totalorder %v166, %v145
    %vm177 = vcmp.eq.s32.totalorder %v169, %v145
    %v178 = vsel %vm170, 1, 0
    %v179 = vsel %vm171, 1, 0
    %v180 = vsel %vm172, 1, 0
    %v181 = vsel %vm173, 1, 0
    %v182 = vsel %vm174, 1, 0
    %v183 = vsel %vm175, 1, 0
    %v184 = vsel %vm176, 1, 0
    %v185 = vsel %vm177, 1, 0
    %v186 = vcvt.s32.f32 %v178
    %v187 = vcvt.s32.f32 %v179
    %v188 = vcvt.s32.f32 %v180
    %v189 = vcvt.s32.f32 %v181
    %v190 = vcvt.s32.f32 %v182
    %v191 = vcvt.s32.f32 %v183
    %v192 = vcvt.s32.f32 %v184
    %v193 = vcvt.s32.f32 %v185
    %v194 = vld [vmem:[%s1] sm:$0xff]
    %v195 = vld [vmem:[%s1 + $0x8] sm:$0xff]
    %v196 = vld [vmem:[%s1 + $0x10] sm:$0xff]
    %v197 = vld [vmem:[%s1 + $0x18] sm:$0xff]
    %v198 = vld [vmem:[%s1 + $0x20] sm:$0xff]
    %v199 = vld [vmem:[%s1 + $0x28] sm:$0xff]
    %v200 = vld [vmem:[%s1 + $0x30] sm:$0xff]
    %v201 = vld [vmem:[%s1 + $0x38] sm:$0xff]
    %v202 = vld [vmem:[%s1 + $0x40] sm:$0xff]
    %v203 = vld [vmem:[%s1 + $0x48] sm:$0xff]
    %v204 = vld [vmem:[%s1 + $0x50] sm:$0xff]
    %v205 = vld [vmem:[%s1 + $0x58] sm:$0xff]
    %v206 = vld [vmem:[%s1 + $0x60] sm:$0xff]
    %v207 = vld [vmem:[%s1 + $0x68] sm:$0xff]
    %v208 = vld [vmem:[%s1 + $0x70] sm:$0xff]
    %v209 = vld [vmem:[%s1 + $0x78] sm:$0xff]
    %210 = vmatprep.subr.mxu0 0.0
    %211 = vmatpush1.msra.mxu0 %v209
    %212 = vmatprep.subr.mxu0 0.0
    %213 = vmatpush1.msra.mxu0 %v208
    %214 = vmatprep.subr.mxu0 0.0
    %215 = vmatpush1.msra.mxu0 %v207
    %216 = vmatprep.subr.mxu0 0.0
    %217 = vmatpush1.msra.mxu0 %v206
    %218 = vmatprep.subr.mxu0 0.0
    %219 = vmatpush1.msra.mxu0 %v205
    %220 = vmatprep.subr.mxu0 0.0
    %221 = vmatpush1.msra.mxu0 %v204
    %222 = vmatprep.subr.mxu0 0.0
    %223 = vmatpush1.msra.mxu0 %v203
    %224 = vmatprep.subr.mxu0 0.0
    %225 = vmatpush1.msra.mxu0 %v202
    %226 = vmatprep.subr.mxu0 0.0
    %227 = vmatpush1.msra.mxu0 %v201
    %228 = vmatprep.subr.mxu0 0.0
    %229 = vmatpush1.msra.mxu0 %v200
    %230 = vmatprep.subr.mxu0 0.0
    %231 = vmatpush1.msra.mxu0 %v199
    %232 = vmatprep.subr.mxu0 0.0
    %233 = vmatpush1.msra.mxu0 %v198
    %234 = vmatprep.subr.mxu0 0.0
    %235 = vmatpush1.msra.mxu0 %v197
    %236 = vmatprep.subr.mxu0 0.0
    %237 = vmatpush1.msra.mxu0 %v196
    %238 = vmatprep.subr.mxu0 0.0
    %239 = vmatpush1.msra.mxu0 %v195
    %240 = vmatprep.subr.mxu0 0.0
    %241 = vmatpush1.msra.mxu0 %v194
    %242 = vmatprep.subr.mxu0 0.0
    %243 = vmatpush2.msra.mxu0 0.0
    %244 = vmatprep.subr.mxu0 0.0
    %245 = vmatpush2.msra.mxu0 0.0
    %246 = vmatprep.subr.mxu0 0.0
    %247 = vmatpush2.msra.mxu0 0.0
    %248 = vmatprep.subr.mxu0 0.0
    %249 = vmatpush2.msra.mxu0 0.0
    %250 = vmatprep.subr.mxu0 0.0
    %251 = vmatpush2.msra.mxu0 0.0
    %252 = vmatprep.subr.mxu0 0.0
    %253 = vmatpush2.msra.mxu0 0.0
    %254 = vmatprep.subr.mxu0 0.0
    %255 = vmatpush2.msra.mxu0 0.0
    %256 = vmatprep.subr.mxu0 0.0
    %257 = vmatpush2.msra.mxu0 0.0
    %258 = vmatprep.subr.mxu0 0.0
    %259 = vmatpush2.msra.mxu0 0.0
    %260 = vmatprep.subr.mxu0 0.0
    %261 = vmatpush2.msra.mxu0 0.0
    %262 = vmatprep.subr.mxu0 0.0
    %263 = vmatpush2.msra.mxu0 0.0
    %264 = vmatprep.subr.mxu0 0.0
    %265 = vmatpush2.msra.mxu0 0.0
    %266 = vmatprep.subr.mxu0 0.0
    %267 = vmatpush2.msra.mxu0 0.0
    %268 = vmatprep.subr.mxu0 0.0
    %269 = vmatpush2.msra.mxu0 0.0
    %270 = vmatprep.subr.mxu0 0.0
    %271 = vmatpush2.msra.mxu0 0.0
    %272 = vmatprep.subr.mxu0 0.0
    %273 = vmatpush2.msra.mxu0 0.0
    %274 = vmatprep.mubr.f32.mxu0 0.0
    %275 = vmatmul.mubr.f32.gmra.mxu0 %v186
    %v276 = vpop.f32.mrf.mxu0
    %v277 = vadd.f32 0.0, %v276
    %v278 = vpop.f32.mrf.mxu0
    %279 = vmatprep.mubr.f32.mxu0 0.0
    %280 = vmatmul.mubr.f32.gmra.mxu0 %v187
    %v281 = vpop.f32.mrf.mxu0
    %v282 = vadd.f32 0.0, %v281
    %v283 = vpop.f32.mrf.mxu0
    %284 = vmatprep.mubr.f32.mxu0 0.0
    %285 = vmatmul.mubr.f32.gmra.mxu0 %v188
    %v286 = vpop.f32.mrf.mxu0
    %v287 = vadd.f32 0.0, %v286
    %v288 = vpop.f32.mrf.mxu0
    %289 = vmatprep.mubr.f32.mxu0 0.0
    %290 = vmatmul.mubr.f32.gmra.mxu0 %v189
    %v291 = vpop.f32.mrf.mxu0
    %v292 = vadd.f32 0.0, %v291
    %v293 = vpop.f32.mrf.mxu0
    %294 = vmatprep.mubr.f32.mxu0 0.0
    %295 = vmatmul.mubr.f32.gmra.mxu0 %v190
    %v296 = vpop.f32.mrf.mxu0
    %v297 = vadd.f32 0.0, %v296
    %v298 = vpop.f32.mrf.mxu0
    %299 = vmatprep.mubr.f32.mxu0 0.0
    %300 = vmatmul.mubr.f32.gmra.mxu0 %v191
    %v301 = vpop.f32.mrf.mxu0
    %v302 = vadd.f32 0.0, %v301
    %v303 = vpop.f32.mrf.mxu0
    %304 = vmatprep.mubr.f32.mxu0 0.0
    %305 = vmatmul.mubr.f32.gmra.mxu0 %v192
    %v306 = vpop.f32.mrf.mxu0
    %v307 = vadd.f32 0.0, %v306
    %v308 = vpop.f32.mrf.mxu0
    %309 = vmatprep.mubr.f32.mxu0 0.0
    %310 = vmatmul.mubr.f32.gmra.mxu0 %v193
    %v311 = vpop.f32.mrf.mxu0
    %v312 = vadd.f32 0.0, %v311
    %v313 = vpop.f32.mrf.mxu0
    %314 = vdwg.mxu0
    %v315 = vmul.u32 %v145, 32
    %vm316 = vcmp.ge.s32.totalorder %v57, %v315
    %vm317 = vcmp.ge.s32.totalorder %v58, %v315
    %vm318 = vcmp.ge.s32.totalorder %v59, %v315
    %vm319 = vcmp.ge.s32.totalorder %v60, %v315
    %vm320 = vcmp.ge.s32.totalorder %v61, %v315
    %vm321 = vcmp.ge.s32.totalorder %v62, %v315
    %vm322 = vcmp.ge.s32.totalorder %v63, %v315
    %vm323 = vcmp.ge.s32.totalorder %v64, %v315
    %v324 = vadd.s32 %v145, 1
    %v325 = vmul.u32 %v324, 32
    %vm326 = vcmp.lt.s32.totalorder %v57, %v325
    %vm327 = vcmp.lt.s32.totalorder %v58, %v325
    %vm328 = vcmp.lt.s32.totalorder %v59, %v325
    %vm329 = vcmp.lt.s32.totalorder %v60, %v325
    %vm330 = vcmp.lt.s32.totalorder %v61, %v325
    %vm331 = vcmp.lt.s32.totalorder %v62, %v325
    %vm332 = vcmp.lt.s32.totalorder %v63, %v325
    %vm333 = vcmp.lt.s32.totalorder %v64, %v325
    %vm334 = vmand %vm316, %vm326
    %vm335 = vmand %vm317, %vm327
    %vm336 = vmand %vm318, %vm328
    %vm337 = vmand %vm319, %vm329
    %vm338 = vmand %vm320, %vm330
    %vm339 = vmand %vm321, %vm331
    %vm340 = vmand %vm322, %vm332
    %vm341 = vmand %vm323, %vm333
    %v342 = vsel %vm89, 1, 0
    %v343 = vsel %vm90, 1, 0
    %v344 = vsel %vm91, 1, 0
    %v345 = vsel %vm92, 1, 0
    %v346 = vsel %vm93, 1, 0
    %v347 = vsel %vm94, 1, 0
    %v348 = vsel %vm95, 1, 0
    %v349 = vsel %vm96, 1, 0
    %vm350 = vcmp.eq.s32.totalorder %v342, 1
    %vm351 = vcmp.eq.s32.totalorder %v343, 1
    %vm352 = vcmp.eq.s32.totalorder %v344, 1
    %vm353 = vcmp.eq.s32.totalorder %v345, 1
    %vm354 = vcmp.eq.s32.totalorder %v346, 1
    %vm355 = vcmp.eq.s32.totalorder %v347, 1
    %vm356 = vcmp.eq.s32.totalorder %v348, 1
    %vm357 = vcmp.eq.s32.totalorder %v349, 1
    %vm358 = vmand %vm334, %vm350
    %vm359 = vmand %vm335, %vm351
    %vm360 = vmand %vm336, %vm352
    %vm361 = vmand %vm337, %vm353
    %vm362 = vmand %vm338, %vm354
    %vm363 = vmand %vm339, %vm355
    %vm364 = vmand %vm340, %vm356
    %vm365 = vmand %vm341, %vm357
    %v366 = vsel %vm358, 1, 0
    %v367 = vsel %vm359, 1, 0
    %v368 = vsel %vm360, 1, 0
    %v369 = vsel %vm361, 1, 0
    %v370 = vsel %vm362, 1, 0
    %v371 = vsel %vm363, 1, 0
    %v372 = vsel %vm364, 1, 0
    %v373 = vsel %vm365, 1, 0
    %v374 = vcvt.s32.f32 %v366
    %v375 = vcvt.s32.f32 %v367
    %v376 = vcvt.s32.f32 %v368
    %v377 = vcvt.s32.f32 %v369
    %v378 = vcvt.s32.f32 %v370
    %v379 = vcvt.s32.f32 %v371
    %v380 = vcvt.s32.f32 %v372
    %v381 = vcvt.s32.f32 %v373
    %v382 = vld [vmem:[%s2] sm:$0xff]
    %vm383 = vcmask 64512
    %v385 = vsel %vm383, %v374, 0
    %v388 = vsel %vm383, %v375, 0
    %v391 = vsel %vm383, %v376, 0
    %v394 = vsel %vm383, %v377, 0
    %v397 = vsel %vm383, %v378, 0
    %v400 = vsel %vm383, %v379, 0
    %v403 = vsel %vm383, %v380, 0
    %v406 = vsel %vm383, %v381, 0
    %408 = vmatprep.subr.mxu0 0.0
    %409 = vmatpush1.msra.mxu0 0.0
    %410 = vmatprep.subr.mxu0 0.0
    %411 = vmatpush1.msra.mxu0 0.0
    %412 = vmatprep.subr.mxu0 0.0
    %413 = vmatpush1.msra.mxu0 0.0
    %414 = vmatprep.subr.mxu0 0.0
    %415 = vmatpush1.msra.mxu0 0.0
    %416 = vmatprep.subr.mxu0 0.0
    %417 = vmatpush1.msra.mxu0 0.0
    %418 = vmatprep.subr.mxu0 0.0
    %419 = vmatpush1.msra.mxu0 0.0
    %420 = vmatprep.subr.mxu0 0.0
    %421 = vmatpush1.msra.mxu0 0.0
    %422 = vmatprep.subr.mxu0 0.0
    %423 = vmatpush1.msra.mxu0 0.0
    %424 = vmatprep.subr.mxu0 0.0
    %425 = vmatpush1.msra.mxu0 0.0
    %426 = vmatprep.subr.mxu0 0.0
    %427 = vmatpush1.msra.mxu0 0.0
    %428 = vmatprep.subr.mxu0 0.0
    %429 = vmatpush1.msra.mxu0 0.0
    %430 = vmatprep.subr.mxu0 0.0
    %431 = vmatpush1.msra.mxu0 0.0
    %432 = vmatprep.subr.mxu0 0.0
    %433 = vmatpush1.msra.mxu0 0.0
    %434 = vmatprep.subr.mxu0 0.0
    %435 = vmatpush1.msra.mxu0 0.0
    %436 = vmatprep.subr.mxu0 0.0
    %437 = vmatpush1.msra.mxu0 0.0
    %438 = vmatprep.subr.mxu0 0.0
    %439 = vmatpush1.msra.mxu0 %v382
    %440 = vmatprep.subr.mxu0 0.0
    %441 = vmatpush2.msra.mxu0 0.0
    %442 = vmatprep.subr.mxu0 0.0
    %443 = vmatpush2.msra.mxu0 0.0
    %444 = vmatprep.subr.mxu0 0.0
    %445 = vmatpush2.msra.mxu0 0.0
    %446 = vmatprep.subr.mxu0 0.0
    %447 = vmatpush2.msra.mxu0 0.0
    %448 = vmatprep.subr.mxu0 0.0
    %449 = vmatpush2.msra.mxu0 0.0
    %450 = vmatprep.subr.mxu0 0.0
    %451 = vmatpush2.msra.mxu0 0.0
    %452 = vmatprep.subr.mxu0 0.0
    %453 = vmatpush2.msra.mxu0 0.0
    %454 = vmatprep.subr.mxu0 0.0
    %455 = vmatpush2.msra.mxu0 0.0
    %456 = vmatprep.subr.mxu0 0.0
    %457 = vmatpush2.msra.mxu0 0.0
    %458 = vmatprep.subr.mxu0 0.0
    %459 = vmatpush2.msra.mxu0 0.0
    %460 = vmatprep.subr.mxu0 0.0
    %461 = vmatpush2.msra.mxu0 0.0
    %462 = vmatprep.subr.mxu0 0.0
    %463 = vmatpush2.msra.mxu0 0.0
    %464 = vmatprep.subr.mxu0 0.0
    %465 = vmatpush2.msra.mxu0 0.0
    %466 = vmatprep.subr.mxu0 0.0
    %467 = vmatpush2.msra.mxu0 0.0
    %468 = vmatprep.subr.mxu0 0.0
    %469 = vmatpush2.msra.mxu0 0.0
    %470 = vmatprep.subr.mxu0 0.0
    %471 = vmatpush2.msra.mxu0 0.0
    %472 = vmatprep.mubr.f32.mxu0 0.0
    %473 = vmatmul.mubr.f32.gmra.mxu0 %v385
    %v474 = vpop.f32.mrf.mxu0
    %v475 = vadd.f32 0.0, %v474
    %v476 = vpop.f32.mrf.mxu0
    %477 = vmatprep.mubr.f32.mxu0 0.0
    %478 = vmatmul.mubr.f32.gmra.mxu0 %v388
    %v479 = vpop.f32.mrf.mxu0
    %v480 = vadd.f32 0.0, %v479
    %v481 = vpop.f32.mrf.mxu0
    %482 = vmatprep.mubr.f32.mxu0 0.0
    %483 = vmatmul.mubr.f32.gmra.mxu0 %v391
    %v484 = vpop.f32.mrf.mxu0
    %v485 = vadd.f32 0.0, %v484
    %v486 = vpop.f32.mrf.mxu0
    %487 = vmatprep.mubr.f32.mxu0 0.0
    %488 = vmatmul.mubr.f32.gmra.mxu0 %v394
    %v489 = vpop.f32.mrf.mxu0
    %v490 = vadd.f32 0.0, %v489
    %v491 = vpop.f32.mrf.mxu0
    %492 = vmatprep.mubr.f32.mxu0 0.0
    %493 = vmatmul.mubr.f32.gmra.mxu0 %v397
    %v494 = vpop.f32.mrf.mxu0
    %v495 = vadd.f32 0.0, %v494
    %v496 = vpop.f32.mrf.mxu0
    %497 = vmatprep.mubr.f32.mxu0 0.0
    %498 = vmatmul.mubr.f32.gmra.mxu0 %v400
    %v499 = vpop.f32.mrf.mxu0
    %v500 = vadd.f32 0.0, %v499
    %v501 = vpop.f32.mrf.mxu0
    %502 = vmatprep.mubr.f32.mxu0 0.0
    %503 = vmatmul.mubr.f32.gmra.mxu0 %v403
    %v504 = vpop.f32.mrf.mxu0
    %v505 = vadd.f32 0.0, %v504
    %v506 = vpop.f32.mrf.mxu0
    %507 = vmatprep.mubr.f32.mxu0 0.0
    %508 = vmatmul.mubr.f32.gmra.mxu0 %v406
    %v509 = vpop.f32.mrf.mxu0
    %v510 = vadd.f32 0.0, %v509
    %v511 = vpop.f32.mrf.mxu0
    %512 = vdwg.mxu0
    %v513 = vmul.f32 %v277, 2.0
    %v514 = vmul.f32 %v282, 2.0
    %v515 = vmul.f32 %v287, 2.0
    %v516 = vmul.f32 %v292, 2.0
    %v517 = vmul.f32 %v297, 2.0
    %v518 = vmul.f32 %v302, 2.0
    %v519 = vmul.f32 %v307, 2.0
    %v520 = vmul.f32 %v312, 2.0
    %v521 = vadd.f32 %v513, %v475
    %v522 = vadd.f32 %v514, %v480
    %v523 = vadd.f32 %v515, %v485
    %v524 = vadd.f32 %v516, %v490
    %v525 = vadd.f32 %v517, %v495
    %v526 = vadd.f32 %v518, %v500
    %v527 = vadd.f32 %v519, %v505
    %v528 = vadd.f32 %v520, %v510
    %529 = vst.msk [vmem:[#allocation2 + $0x8] sm:$0xff] %vm129, %v521
    %530 = vst.msk [vmem:[#allocation2 + $0x10] sm:$0xff] %vm129, %v522
    %531 = vst.msk [vmem:[#allocation2 + $0x18] sm:$0xff] %vm129, %v523
    %532 = vst.msk [vmem:[#allocation2 + $0x20] sm:$0xff] %vm129, %v524
    %533 = vst.msk [vmem:[#allocation2 + $0x28] sm:$0xff] %vm129, %v525
    %534 = vst.msk [vmem:[#allocation2 + $0x30] sm:$0xff] %vm129, %v526
    %535 = vst.msk [vmem:[#allocation2 + $0x38] sm:$0xff] %vm129, %v527
    %536 = vst.msk [vmem:[#allocation2 + $0x40] sm:$0xff] %vm129, %v528
    %v537 = vld [vmem:[#allocation8] sm:$0x1]
    %v538 = vld [vmem:[#allocation2 + $0x7] sm:$0xff]
    %v539 = vld [vmem:[#allocation2 + $0xf] sm:$0xff]
    %v540 = vld [vmem:[#allocation2 + $0x17] sm:$0xff]
    %v541 = vld [vmem:[#allocation2 + $0x1f] sm:$0xff]
    %v542 = vld [vmem:[#allocation2 + $0x27] sm:$0xff]
    %v543 = vld [vmem:[#allocation2 + $0x2f] sm:$0xff]
    %v544 = vld [vmem:[#allocation2 + $0x37] sm:$0xff]
    %v545 = vld [vmem:[#allocation2 + $0x3f] sm:$0xff]
    %v546 = vld [vmem:[%s3] sm:$0xff]
    %v547 = vld [vmem:[%s3 + $0x8] sm:$0xff]
    %v548 = vld [vmem:[%s3 + $0x10] sm:$0xff]
    %v549 = vld [vmem:[%s3 + $0x18] sm:$0xff]
    %v550 = vld [vmem:[#allocation2 + $0x8] sm:$0xff]
    %v551 = vld [vmem:[#allocation2 + $0x10] sm:$0xff]
    %v552 = vld [vmem:[#allocation2 + $0x18] sm:$0xff]
    %v553 = vld [vmem:[#allocation2 + $0x20] sm:$0xff]
    %v554 = vld [vmem:[#allocation2 + $0x28] sm:$0xff]
    %v555 = vld [vmem:[#allocation2 + $0x30] sm:$0xff]
    %v556 = vld [vmem:[#allocation2 + $0x38] sm:$0xff]
    %v557 = vld [vmem:[#allocation2 + $0x40] sm:$0xff]
    %s558 = scalar_lea.vmem %s3, 32
    %v559 = vld [vmem:[%s558] sm:$0xff]
    %v560 = vld [vmem:[%s558 + $0x8] sm:$0xff]
    %v561 = vld [vmem:[%s558 + $0x10] sm:$0xff]
    %v562 = vld [vmem:[%s558 + $0x18] sm:$0xff]
    %v564 = vsel %vm129, %v550, 0
    %v567 = vsel %vm129, %v551, 0
    %v570 = vsel %vm129, %v552, 0
    %v573 = vsel %vm129, %v553, 0
    %v576 = vsel %vm129, %v554, 0
    %v579 = vsel %vm129, %v555, 0
    %v582 = vsel %vm129, %v556, 0
    %v585 = vsel %vm129, %v557, 0
    %587 = vmatprep.subr.mxu0 0.0
    %588 = vmatpush1.msra.mxu0 0.0
    %589 = vmatprep.subr.mxu0 0.0
    %590 = vmatpush1.msra.mxu0 0.0
    %591 = vmatprep.subr.mxu0 0.0
    %592 = vmatpush1.msra.mxu0 0.0
    %593 = vmatprep.subr.mxu0 0.0
    %594 = vmatpush1.msra.mxu0 0.0
    %595 = vmatprep.subr.mxu0 0.0
    %596 = vmatpush1.msra.mxu0 0.0
    %597 = vmatprep.subr.mxu0 0.0
    %598 = vmatpush1.msra.mxu0 0.0
    %599 = vmatprep.subr.mxu0 0.0
    %600 = vmatpush1.msra.mxu0 0.0
    %601 = vmatprep.subr.mxu0 0.0
    %602 = vmatpush1.msra.mxu0 0.0
    %603 = vmatprep.subr.mxu0 0.0
    %604 = vmatpush1.msra.mxu0 0.0
    %605 = vmatprep.subr.mxu0 0.0
    %606 = vmatpush1.msra.mxu0 0.0
    %607 = vmatprep.subr.mxu0 0.0
    %608 = vmatpush1.msra.mxu0 0.0
    %609 = vmatprep.subr.mxu0 0.0
    %610 = vmatpush1.msra.mxu0 0.0
    %611 = vmatprep.subr.mxu0 0.0
    %612 = vmatpush1.msra.mxu0 %v562
    %613 = vmatprep.subr.mxu0 0.0
    %614 = vmatpush1.msra.mxu0 %v561
    %615 = vmatprep.subr.mxu0 0.0
    %616 = vmatpush1.msra.mxu0 %v560
    %617 = vmatprep.subr.mxu0 0.0
    %618 = vmatpush1.msra.mxu0 %v559
    %619 = vmatprep.subr.mxu0 0.0
    %620 = vmatpush2.msra.mxu0 0.0
    %621 = vmatprep.subr.mxu0 0.0
    %622 = vmatpush2.msra.mxu0 0.0
    %623 = vmatprep.subr.mxu0 0.0
    %624 = vmatpush2.msra.mxu0 0.0
    %625 = vmatprep.subr.mxu0 0.0
    %626 = vmatpush2.msra.mxu0 0.0
    %627 = vmatprep.subr.mxu0 0.0
    %628 = vmatpush2.msra.mxu0 0.0
    %629 = vmatprep.subr.mxu0 0.0
    %630 = vmatpush2.msra.mxu0 0.0
    %631 = vmatprep.subr.mxu0 0.0
    %632 = vmatpush2.msra.mxu0 0.0
    %633 = vmatprep.subr.mxu0 0.0
    %634 = vmatpush2.msra.mxu0 0.0
    %635 = vmatprep.subr.mxu0 0.0
    %636 = vmatpush2.msra.mxu0 0.0
    %637 = vmatprep.subr.mxu0 0.0
    %638 = vmatpush2.msra.mxu0 0.0
    %639 = vmatprep.subr.mxu0 0.0
    %640 = vmatpush2.msra.mxu0 0.0
    %641 = vmatprep.subr.mxu0 0.0
    %642 = vmatpush2.msra.mxu0 0.0
    %643 = vmatprep.subr.mxu0 0.0
    %644 = vmatpush2.msra.mxu0 0.0
    %645 = vmatprep.subr.mxu0 0.0
    %646 = vmatpush2.msra.mxu0 0.0
    %647 = vmatprep.subr.mxu0 0.0
    %648 = vmatpush2.msra.mxu0 0.0
    %649 = vmatprep.subr.mxu0 0.0
    %650 = vmatpush2.msra.mxu0 0.0
    %651 = vmatprep.mubr.f32.mxu0 0.0
    %652 = vmatmul.mubr.f32.gmra.mxu0 %v564
    %v653 = vpop.f32.mrf.mxu0
    %v654 = vadd.f32 0.0, %v653
    %v655 = vpop.f32.mrf.mxu0
    %656 = vmatprep.mubr.f32.mxu0 0.0
    %657 = vmatmul.mubr.f32.gmra.mxu0 %v567
    %v658 = vpop.f32.mrf.mxu0
    %v659 = vadd.f32 0.0, %v658
    %v660 = vpop.f32.mrf.mxu0
    %661 = vmatprep.mubr.f32.mxu0 0.0
    %662 = vmatmul.mubr.f32.gmra.mxu0 %v570
    %v663 = vpop.f32.mrf.mxu0
    %v664 = vadd.f32 0.0, %v663
    %v665 = vpop.f32.mrf.mxu0
    %666 = vmatprep.mubr.f32.mxu0 0.0
    %667 = vmatmul.mubr.f32.gmra.mxu0 %v573
    %v668 = vpop.f32.mrf.mxu0
    %v669 = vadd.f32 0.0, %v668
    %v670 = vpop.f32.mrf.mxu0
    %671 = vmatprep.mubr.f32.mxu0 0.0
    %672 = vmatmul.mubr.f32.gmra.mxu0 %v576
    %v673 = vpop.f32.mrf.mxu0
    %v674 = vadd.f32 0.0, %v673
    %v675 = vpop.f32.mrf.mxu0
    %676 = vmatprep.mubr.f32.mxu0 0.0
    %677 = vmatmul.mubr.f32.gmra.mxu0 %v579
    %v678 = vpop.f32.mrf.mxu0
    %v679 = vadd.f32 0.0, %v678
    %v680 = vpop.f32.mrf.mxu0
    %681 = vmatprep.mubr.f32.mxu0 0.0
    %682 = vmatmul.mubr.f32.gmra.mxu0 %v582
    %v683 = vpop.f32.mrf.mxu0
    %v684 = vadd.f32 0.0, %v683
    %v685 = vpop.f32.mrf.mxu0
    %686 = vmatprep.mubr.f32.mxu0 0.0
    %687 = vmatmul.mubr.f32.gmra.mxu0 %v585
    %v688 = vpop.f32.mrf.mxu0
    %v689 = vadd.f32 0.0, %v688
    %v690 = vpop.f32.mrf.mxu0
    %691 = vdwg.mxu0
    %v693 = vsel %vm129, %v538, 0
    %v696 = vsel %vm129, %v539, 0
    %v699 = vsel %vm129, %v540, 0
    %v702 = vsel %vm129, %v541, 0
    %v705 = vsel %vm129, %v542, 0
    %v708 = vsel %vm129, %v543, 0
    %v711 = vsel %vm129, %v544, 0
    %v714 = vsel %vm129, %v545, 0
    %716 = vmatprep.subr.mxu0 0.0
    %717 = vmatpush1.msra.mxu0 0.0
    %718 = vmatprep.subr.mxu0 0.0
    %719 = vmatpush1.msra.mxu0 0.0
    %720 = vmatprep.subr.mxu0 0.0
    %721 = vmatpush1.msra.mxu0 0.0
    %722 = vmatprep.subr.mxu0 0.0
    %723 = vmatpush1.msra.mxu0 0.0
    %724 = vmatprep.subr.mxu0 0.0
    %725 = vmatpush1.msra.mxu0 0.0
    %726 = vmatprep.subr.mxu0 0.0
    %727 = vmatpush1.msra.mxu0 0.0
    %728 = vmatprep.subr.mxu0 0.0
    %729 = vmatpush1.msra.mxu0 0.0
    %730 = vmatprep.subr.mxu0 0.0
    %731 = vmatpush1.msra.mxu0 0.0
    %732 = vmatprep.subr.mxu0 0.0
    %733 = vmatpush1.msra.mxu0 0.0
    %734 = vmatprep.subr.mxu0 0.0
    %735 = vmatpush1.msra.mxu0 0.0
    %736 = vmatprep.subr.mxu0 0.0
    %737 = vmatpush1.msra.mxu0 0.0
    %738 = vmatprep.subr.mxu0 0.0
    %739 = vmatpush1.msra.mxu0 0.0
    %740 = vmatprep.subr.mxu0 0.0
    %741 = vmatpush1.msra.mxu0 %v549
    %742 = vmatprep.subr.mxu0 0.0
    %743 = vmatpush1.msra.mxu0 %v548
    %744 = vmatprep.subr.mxu0 0.0
    %745 = vmatpush1.msra.mxu0 %v547
    %746 = vmatprep.subr.mxu0 0.0
    %747 = vmatpush1.msra.mxu0 %v546
    %748 = vmatprep.subr.mxu0 0.0
    %749 = vmatpush2.msra.mxu0 0.0
    %750 = vmatprep.subr.mxu0 0.0
    %751 = vmatpush2.msra.mxu0 0.0
    %752 = vmatprep.subr.mxu0 0.0
    %753 = vmatpush2.msra.mxu0 0.0
    %754 = vmatprep.subr.mxu0 0.0
    %755 = vmatpush2.msra.mxu0 0.0
    %756 = vmatprep.subr.mxu0 0.0
    %757 = vmatpush2.msra.mxu0 0.0
    %758 = vmatprep.subr.mxu0 0.0
    %759 = vmatpush2.msra.mxu0 0.0
    %760 = vmatprep.subr.mxu0 0.0
    %761 = vmatpush2.msra.mxu0 0.0
    %762 = vmatprep.subr.mxu0 0.0
    %763 = vmatpush2.msra.mxu0 0.0
    %764 = vmatprep.subr.mxu0 0.0
    %765 = vmatpush2.msra.mxu0 0.0
    %766 = vmatprep.subr.mxu0 0.0
    %767 = vmatpush2.msra.mxu0 0.0
    %768 = vmatprep.subr.mxu0 0.0
    %769 = vmatpush2.msra.mxu0 0.0
    %770 = vmatprep.subr.mxu0 0.0
    %771 = vmatpush2.msra.mxu0 0.0
    %772 = vmatprep.subr.mxu0 0.0
    %773 = vmatpush2.msra.mxu0 0.0
    %774 = vmatprep.subr.mxu0 0.0
    %775 = vmatpush2.msra.mxu0 0.0
    %776 = vmatprep.subr.mxu0 0.0
    %777 = vmatpush2.msra.mxu0 0.0
    %778 = vmatprep.subr.mxu0 0.0
    %779 = vmatpush2.msra.mxu0 0.0
    %780 = vmatprep.mubr.f32.mxu0 0.0
    %781 = vmatmul.mubr.f32.gmra.mxu0 %v693
    %v782 = vpop.f32.mrf.mxu0
    %v783 = vadd.f32 %v654, %v782
    %v784 = vpop.f32.mrf.mxu0
    %785 = vmatprep.mubr.f32.mxu0 0.0
    %786 = vmatmul.mubr.f32.gmra.mxu0 %v696
    %v787 = vpop.f32.mrf.mxu0
    %v788 = vadd.f32 %v659, %v787
    %v789 = vpop.f32.mrf.mxu0
    %790 = vmatprep.mubr.f32.mxu0 0.0
    %791 = vmatmul.mubr.f32.gmra.mxu0 %v699
    %v792 = vpop.f32.mrf.mxu0
    %v793 = vadd.f32 %v664, %v792
    %v794 = vpop.f32.mrf.mxu0
    %795 = vmatprep.mubr.f32.mxu0 0.0
    %796 = vmatmul.mubr.f32.gmra.mxu0 %v702
    %v797 = vpop.f32.mrf.mxu0
    %v798 = vadd.f32 %v669, %v797
    %v799 = vpop.f32.mrf.mxu0
    %800 = vmatprep.mubr.f32.mxu0 0.0
    %801 = vmatmul.mubr.f32.gmra.mxu0 %v705
    %v802 = vpop.f32.mrf.mxu0
    %v803 = vadd.f32 %v674, %v802
    %v804 = vpop.f32.mrf.mxu0
    %805 = vmatprep.mubr.f32.mxu0 0.0
    %806 = vmatmul.mubr.f32.gmra.mxu0 %v708
    %v807 = vpop.f32.mrf.mxu0
    %v808 = vadd.f32 %v679, %v807
    %v809 = vpop.f32.mrf.mxu0
    %810 = vmatprep.mubr.f32.mxu0 0.0
    %811 = vmatmul.mubr.f32.gmra.mxu0 %v711
    %v812 = vpop.f32.mrf.mxu0
    %v813 = vadd.f32 %v684, %v812
    %v814 = vpop.f32.mrf.mxu0
    %815 = vmatprep.mubr.f32.mxu0 0.0
    %816 = vmatmul.mubr.f32.gmra.mxu0 %v714
    %v817 = vpop.f32.mrf.mxu0
    %v818 = vadd.f32 %v689, %v817
    %v819 = vpop.f32.mrf.mxu0
    %820 = vdwg.mxu0
    %v821 = vld [vmem:[#allocation2 + $0x9] sm:$0xff]
    %v822 = vld [vmem:[#allocation2 + $0x11] sm:$0xff]
    %v823 = vld [vmem:[#allocation2 + $0x19] sm:$0xff]
    %v824 = vld [vmem:[#allocation2 + $0x21] sm:$0xff]
    %v825 = vld [vmem:[#allocation2 + $0x29] sm:$0xff]
    %v826 = vld [vmem:[#allocation2 + $0x31] sm:$0xff]
    %v827 = vld [vmem:[#allocation2 + $0x39] sm:$0xff]
    %v828 = vld [vmem:[#allocation2 + $0x41] sm:$0xff]
    %s829 = scalar_lea.vmem %s3, 64
    %v830 = vld [vmem:[%s829] sm:$0xff]
    %v831 = vld [vmem:[%s829 + $0x8] sm:$0xff]
    %v832 = vld [vmem:[%s829 + $0x10] sm:$0xff]
    %v833 = vld [vmem:[%s829 + $0x18] sm:$0xff]
    %v835 = vsel %vm129, %v821, 0
    %v838 = vsel %vm129, %v822, 0
    %v841 = vsel %vm129, %v823, 0
    %v844 = vsel %vm129, %v824, 0
    %v847 = vsel %vm129, %v825, 0
    %v850 = vsel %vm129, %v826, 0
    %v853 = vsel %vm129, %v827, 0
    %v856 = vsel %vm129, %v828, 0
    %858 = vmatprep.subr.mxu0 0.0
    %859 = vmatpush1.msra.mxu0 0.0
    %860 = vmatprep.subr.mxu0 0.0
    %861 = vmatpush1.msra.mxu0 0.0
    %862 = vmatprep.subr.mxu0 0.0
    %863 = vmatpush1.msra.mxu0 0.0
    %864 = vmatprep.subr.mxu0 0.0
    %865 = vmatpush1.msra.mxu0 0.0
    %866 = vmatprep.subr.mxu0 0.0
    %867 = vmatpush1.msra.mxu0 0.0
    %868 = vmatprep.subr.mxu0 0.0
    %869 = vmatpush1.msra.mxu0 0.0
    %870 = vmatprep.subr.mxu0 0.0
    %871 = vmatpush1.msra.mxu0 0.0
    %872 = vmatprep.subr.mxu0 0.0
    %873 = vmatpush1.msra.mxu0 0.0
    %874 = vmatprep.subr.mxu0 0.0
    %875 = vmatpush1.msra.mxu0 0.0
    %876 = vmatprep.subr.mxu0 0.0
    %877 = vmatpush1.msra.mxu0 0.0
    %878 = vmatprep.subr.mxu0 0.0
    %879 = vmatpush1.msra.mxu0 0.0
    %880 = vmatprep.subr.mxu0 0.0
    %881 = vmatpush1.msra.mxu0 0.0
    %882 = vmatprep.subr.mxu0 0.0
    %883 = vmatpush1.msra.mxu0 %v833
    %884 = vmatprep.subr.mxu0 0.0
    %885 = vmatpush1.msra.mxu0 %v832
    %886 = vmatprep.subr.mxu0 0.0
    %887 = vmatpush1.msra.mxu0 %v831
    %888 = vmatprep.subr.mxu0 0.0
    %889 = vmatpush1.msra.mxu0 %v830
    %890 = vmatprep.subr.mxu0 0.0
    %891 = vmatpush2.msra.mxu0 0.0
    %892 = vmatprep.subr.mxu0 0.0
    %893 = vmatpush2.msra.mxu0 0.0
    %894 = vmatprep.subr.mxu0 0.0
    %895 = vmatpush2.msra.mxu0 0.0
    %896 = vmatprep.subr.mxu0 0.0
    %897 = vmatpush2.msra.mxu0 0.0
    %898 = vmatprep.subr.mxu0 0.0
    %899 = vmatpush2.msra.mxu0 0.0
    %900 = vmatprep.subr.mxu0 0.0
    %901 = vmatpush2.msra.mxu0 0.0
    %902 = vmatprep.subr.mxu0 0.0
    %903 = vmatpush2.msra.mxu0 0.0
    %904 = vmatprep.subr.mxu0 0.0
    %905 = vmatpush2.msra.mxu0 0.0
    %906 = vmatprep.subr.mxu0 0.0
    %907 = vmatpush2.msra.mxu0 0.0
    %908 = vmatprep.subr.mxu0 0.0
    %909 = vmatpush2.msra.mxu0 0.0
    %910 = vmatprep.subr.mxu0 0.0
    %911 = vmatpush2.msra.mxu0 0.0
    %912 = vmatprep.subr.mxu0 0.0
    %913 = vmatpush2.msra.mxu0 0.0
    %914 = vmatprep.subr.mxu0 0.0
    %915 = vmatpush2.msra.mxu0 0.0
    %916 = vmatprep.subr.mxu0 0.0
    %917 = vmatpush2.msra.mxu0 0.0
    %918 = vmatprep.subr.mxu0 0.0
    %919 = vmatpush2.msra.mxu0 0.0
    %920 = vmatprep.subr.mxu0 0.0
    %921 = vmatpush2.msra.mxu0 0.0
    %922 = vmatprep.mubr.f32.mxu0 0.0
    %923 = vmatmul.mubr.f32.gmra.mxu0 %v835
    %v924 = vpop.f32.mrf.mxu0
    %v925 = vadd.f32 0.0, %v924
    %v926 = vpop.f32.mrf.mxu0
    %927 = vmatprep.mubr.f32.mxu0 0.0
    %928 = vmatmul.mubr.f32.gmra.mxu0 %v838
    %v929 = vpop.f32.mrf.mxu0
    %v930 = vadd.f32 0.0, %v929
    %v931 = vpop.f32.mrf.mxu0
    %932 = vmatprep.mubr.f32.mxu0 0.0
    %933 = vmatmul.mubr.f32.gmra.mxu0 %v841
    %v934 = vpop.f32.mrf.mxu0
    %v935 = vadd.f32 0.0, %v934
    %v936 = vpop.f32.mrf.mxu0
    %937 = vmatprep.mubr.f32.mxu0 0.0
    %938 = vmatmul.mubr.f32.gmra.mxu0 %v844
    %v939 = vpop.f32.mrf.mxu0
    %v940 = vadd.f32 0.0, %v939
    %v941 = vpop.f32.mrf.mxu0
    %942 = vmatprep.mubr.f32.mxu0 0.0
    %943 = vmatmul.mubr.f32.gmra.mxu0 %v847
    %v944 = vpop.f32.mrf.mxu0
    %v945 = vadd.f32 0.0, %v944
    %v946 = vpop.f32.mrf.mxu0
    %947 = vmatprep.mubr.f32.mxu0 0.0
    %948 = vmatmul.mubr.f32.gmra.mxu0 %v850
    %v949 = vpop.f32.mrf.mxu0
    %v950 = vadd.f32 0.0, %v949
    %v951 = vpop.f32.mrf.mxu0
    %952 = vmatprep.mubr.f32.mxu0 0.0
    %953 = vmatmul.mubr.f32.gmra.mxu0 %v853
    %v954 = vpop.f32.mrf.mxu0
    %v955 = vadd.f32 0.0, %v954
    %v956 = vpop.f32.mrf.mxu0
    %957 = vmatprep.mubr.f32.mxu0 0.0
    %958 = vmatmul.mubr.f32.gmra.mxu0 %v856
    %v959 = vpop.f32.mrf.mxu0
    %v960 = vadd.f32 0.0, %v959
    %v961 = vpop.f32.mrf.mxu0
    %962 = vdwg.mxu0
    %v963 = vadd.f32 %v783, %v925
    %v964 = vadd.f32 %v788, %v930
    %v965 = vadd.f32 %v793, %v935
    %v966 = vadd.f32 %v798, %v940
    %v967 = vadd.f32 %v803, %v945
    %v968 = vadd.f32 %v808, %v950
    %v969 = vadd.f32 %v813, %v955
    %v970 = vadd.f32 %v818, %v960
    %v971 = vld [vmem:[#allocation2 + $0xa] sm:$0xff]
    %v972 = vld [vmem:[#allocation2 + $0x12] sm:$0xff]
    %v973 = vld [vmem:[#allocation2 + $0x1a] sm:$0xff]
    %v974 = vld [vmem:[#allocation2 + $0x22] sm:$0xff]
    %v975 = vld [vmem:[#allocation2 + $0x2a] sm:$0xff]
    %v976 = vld [vmem:[#allocation2 + $0x32] sm:$0xff]
    %v977 = vld [vmem:[#allocation2 + $0x3a] sm:$0xff]
    %v978 = vld [vmem:[#allocation2 + $0x42] sm:$0xff]
    %s979 = scalar_lea.vmem %s3, 96
    %v980 = vld [vmem:[%s979] sm:$0xff]
    %v981 = vld [vmem:[%s979 + $0x8] sm:$0xff]
    %v982 = vld [vmem:[%s979 + $0x10] sm:$0xff]
    %v983 = vld [vmem:[%s979 + $0x18] sm:$0xff]
    %v985 = vsel %vm129, %v971, 0
    %v988 = vsel %vm129, %v972, 0
    %v991 = vsel %vm129, %v973, 0
    %v994 = vsel %vm129, %v974, 0
    %v997 = vsel %vm129, %v975, 0
    %v1000 = vsel %vm129, %v976, 0
    %v1003 = vsel %vm129, %v977, 0
    %v1006 = vsel %vm129, %v978, 0
    %1008 = vmatprep.subr.mxu0 0.0
    %1009 = vmatpush1.msra.mxu0 0.0
    %1010 = vmatprep.subr.mxu0 0.0
    %1011 = vmatpush1.msra.mxu0 0.0
    %1012 = vmatprep.subr.mxu0 0.0
    %1013 = vmatpush1.msra.mxu0 0.0
    %1014 = vmatprep.subr.mxu0 0.0
    %1015 = vmatpush1.msra.mxu0 0.0
    %1016 = vmatprep.subr.mxu0 0.0
    %1017 = vmatpush1.msra.mxu0 0.0
    %1018 = vmatprep.subr.mxu0 0.0
    %1019 = vmatpush1.msra.mxu0 0.0
    %1020 = vmatprep.subr.mxu0 0.0
    %1021 = vmatpush1.msra.mxu0 0.0
    %1022 = vmatprep.subr.mxu0 0.0
    %1023 = vmatpush1.msra.mxu0 0.0
    %1024 = vmatprep.subr.mxu0 0.0
    %1025 = vmatpush1.msra.mxu0 0.0
    %1026 = vmatprep.subr.mxu0 0.0
    %1027 = vmatpush1.msra.mxu0 0.0
    %1028 = vmatprep.subr.mxu0 0.0
    %1029 = vmatpush1.msra.mxu0 0.0
    %1030 = vmatprep.subr.mxu0 0.0
    %1031 = vmatpush1.msra.mxu0 0.0
    %1032 = vmatprep.subr.mxu0 0.0
    %1033 = vmatpush1.msra.mxu0 %v983
    %1034 = vmatprep.subr.mxu0 0.0
    %1035 = vmatpush1.msra.mxu0 %v982
    %1036 = vmatprep.subr.mxu0 0.0
    %1037 = vmatpush1.msra.mxu0 %v981
    %1038 = vmatprep.subr.mxu0 0.0
    %1039 = vmatpush1.msra.mxu0 %v980
    %1040 = vmatprep.subr.mxu0 0.0
    %1041 = vmatpush2.msra.mxu0 0.0
    %1042 = vmatprep.subr.mxu0 0.0
    %1043 = vmatpush2.msra.mxu0 0.0
    %1044 = vmatprep.subr.mxu0 0.0
    %1045 = vmatpush2.msra.mxu0 0.0
    %1046 = vmatprep.subr.mxu0 0.0
    %1047 = vmatpush2.msra.mxu0 0.0
    %1048 = vmatprep.subr.mxu0 0.0
    %1049 = vmatpush2.msra.mxu0 0.0
    %1050 = vmatprep.subr.mxu0 0.0
    %1051 = vmatpush2.msra.mxu0 0.0
    %1052 = vmatprep.subr.mxu0 0.0
    %1053 = vmatpush2.msra.mxu0 0.0
    %1054 = vmatprep.subr.mxu0 0.0
    %1055 = vmatpush2.msra.mxu0 0.0
    %1056 = vmatprep.subr.mxu0 0.0
    %1057 = vmatpush2.msra.mxu0 0.0
    %1058 = vmatprep.subr.mxu0 0.0
    %1059 = vmatpush2.msra.mxu0 0.0
    %1060 = vmatprep.subr.mxu0 0.0
    %1061 = vmatpush2.msra.mxu0 0.0
    %1062 = vmatprep.subr.mxu0 0.0
    %1063 = vmatpush2.msra.mxu0 0.0
    %1064 = vmatprep.subr.mxu0 0.0
    %1065 = vmatpush2.msra.mxu0 0.0
    %1066 = vmatprep.subr.mxu0 0.0
    %1067 = vmatpush2.msra.mxu0 0.0
    %1068 = vmatprep.subr.mxu0 0.0
    %1069 = vmatpush2.msra.mxu0 0.0
    %1070 = vmatprep.subr.mxu0 0.0
    %1071 = vmatpush2.msra.mxu0 0.0
    %1072 = vmatprep.mubr.f32.mxu0 0.0
    %1073 = vmatmul.mubr.f32.gmra.mxu0 %v985
    %v1074 = vpop.f32.mrf.mxu0
    %v1075 = vadd.f32 0.0, %v1074
    %v1076 = vpop.f32.mrf.mxu0
    %1077 = vmatprep.mubr.f32.mxu0 0.0
    %1078 = vmatmul.mubr.f32.gmra.mxu0 %v988
    %v1079 = vpop.f32.mrf.mxu0
    %v1080 = vadd.f32 0.0, %v1079
    %v1081 = vpop.f32.mrf.mxu0
    %1082 = vmatprep.mubr.f32.mxu0 0.0
    %1083 = vmatmul.mubr.f32.gmra.mxu0 %v991
    %v1084 = vpop.f32.mrf.mxu0
    %v1085 = vadd.f32 0.0, %v1084
    %v1086 = vpop.f32.mrf.mxu0
    %1087 = vmatprep.mubr.f32.mxu0 0.0
    %1088 = vmatmul.mubr.f32.gmra.mxu0 %v994
    %v1089 = vpop.f32.mrf.mxu0
    %v1090 = vadd.f32 0.0, %v1089
    %v1091 = vpop.f32.mrf.mxu0
    %1092 = vmatprep.mubr.f32.mxu0 0.0
    %1093 = vmatmul.mubr.f32.gmra.mxu0 %v997
    %v1094 = vpop.f32.mrf.mxu0
    %v1095 = vadd.f32 0.0, %v1094
    %v1096 = vpop.f32.mrf.mxu0
    %1097 = vmatprep.mubr.f32.mxu0 0.0
    %1098 = vmatmul.mubr.f32.gmra.mxu0 %v1000
    %v1099 = vpop.f32.mrf.mxu0
    %v1100 = vadd.f32 0.0, %v1099
    %v1101 = vpop.f32.mrf.mxu0
    %1102 = vmatprep.mubr.f32.mxu0 0.0
    %1103 = vmatmul.mubr.f32.gmra.mxu0 %v1003
    %v1104 = vpop.f32.mrf.mxu0
    %v1105 = vadd.f32 0.0, %v1104
    %v1106 = vpop.f32.mrf.mxu0
    %1107 = vmatprep.mubr.f32.mxu0 0.0
    %1108 = vmatmul.mubr.f32.gmra.mxu0 %v1006
    %v1109 = vpop.f32.mrf.mxu0
    %v1110 = vadd.f32 0.0, %v1109
    %v1111 = vpop.f32.mrf.mxu0
    %1112 = vdwg.mxu0
    %v1113 = vadd.f32 %v963, %v1075
    %v1114 = vadd.f32 %v964, %v1080
    %v1115 = vadd.f32 %v965, %v1085
    %v1116 = vadd.f32 %v966, %v1090
    %v1117 = vadd.f32 %v967, %v1095
    %v1118 = vadd.f32 %v968, %v1100
    %v1119 = vadd.f32 %v969, %v1105
    %v1120 = vadd.f32 %v970, %v1110
    %v1121 = vlaneseq
    %v1122 = vshrl.u32 %v1121, 7
    %v1123 = vsub.s32 0, %v1122
    %v1124 = vrot.slane %v537, %v1123
    %v1125 = vadd.f32 %v1113, %v1124
    %v1126 = vadd.f32 %v1114, %v1124
    %v1127 = vadd.f32 %v1115, %v1124
    %v1128 = vadd.f32 %v1116, %v1124
    %v1129 = vadd.f32 %v1117, %v1124
    %v1130 = vadd.f32 %v1118, %v1124
    %v1131 = vadd.f32 %v1119, %v1124
    %v1132 = vadd.f32 %v1120, %v1124
    %v1133 = vmax.f32 %v1125, 0.0
    %v1134 = vmax.f32 %v1126, 0.0
    %v1135 = vmax.f32 %v1127, 0.0
    %v1136 = vmax.f32 %v1128, 0.0
    %v1137 = vmax.f32 %v1129, 0.0
    %v1138 = vmax.f32 %v1130, 0.0
    %v1139 = vmax.f32 %v1131, 0.0
    %v1140 = vmax.f32 %v1132, 0.0
    %v1141 = vmul.f32 %v1133, %v121
    %v1142 = vmul.f32 %v1134, %v122
    %v1143 = vmul.f32 %v1135, %v123
    %v1144 = vmul.f32 %v1136, %v124
    %v1145 = vmul.f32 %v1137, %v125
    %v1146 = vmul.f32 %v1138, %v126
    %v1147 = vmul.f32 %v1139, %v127
    %v1148 = vmul.f32 %v1140, %v128
    %1149 = vst.msk [vmem:[#allocation3 + $0x8] sm:$0xff] %vm129, %v1141
    %1150 = vst.msk [vmem:[#allocation3 + $0x10] sm:$0xff] %vm129, %v1142
    %1151 = vst.msk [vmem:[#allocation3 + $0x18] sm:$0xff] %vm129, %v1143
    %1152 = vst.msk [vmem:[#allocation3 + $0x20] sm:$0xff] %vm129, %v1144
    %1153 = vst.msk [vmem:[#allocation3 + $0x28] sm:$0xff] %vm129, %v1145
    %1154 = vst.msk [vmem:[#allocation3 + $0x30] sm:$0xff] %vm129, %v1146
    %1155 = vst.msk [vmem:[#allocation3 + $0x38] sm:$0xff] %vm129, %v1147
    %1156 = vst.msk [vmem:[#allocation3 + $0x40] sm:$0xff] %vm129, %v1148
    %v1157 = vld [vmem:[#allocation8 + $0x1] sm:$0x1]
    %v1158 = vld [vmem:[#allocation3 + $0x7] sm:$0xff]
    %v1159 = vld [vmem:[#allocation3 + $0xf] sm:$0xff]
    %v1160 = vld [vmem:[#allocation3 + $0x17] sm:$0xff]
    %v1161 = vld [vmem:[#allocation3 + $0x1f] sm:$0xff]
    %v1162 = vld [vmem:[#allocation3 + $0x27] sm:$0xff]
    %v1163 = vld [vmem:[#allocation3 + $0x2f] sm:$0xff]
    %v1164 = vld [vmem:[#allocation3 + $0x37] sm:$0xff]
    %v1165 = vld [vmem:[#allocation3 + $0x3f] sm:$0xff]
    %v1166 = vld [vmem:[%s4] sm:$0xff]
    %v1167 = vld [vmem:[%s4 + $0x8] sm:$0xff]
    %v1168 = vld [vmem:[%s4 + $0x10] sm:$0xff]
    %v1169 = vld [vmem:[%s4 + $0x18] sm:$0xff]
    %v1170 = vld [vmem:[#allocation3 + $0x8] sm:$0xff]
    %v1171 = vld [vmem:[#allocation3 + $0x10] sm:$0xff]
    %v1172 = vld [vmem:[#allocation3 + $0x18] sm:$0xff]
    %v1173 = vld [vmem:[#allocation3 + $0x20] sm:$0xff]
    %v1174 = vld [vmem:[#allocation3 + $0x28] sm:$0xff]
    %v1175 = vld [vmem:[#allocation3 + $0x30] sm:$0xff]
    %v1176 = vld [vmem:[#allocation3 + $0x38] sm:$0xff]
    %v1177 = vld [vmem:[#allocation3 + $0x40] sm:$0xff]
    %s1178 = scalar_lea.vmem %s4, 32
    %v1179 = vld [vmem:[%s1178] sm:$0xff]
    %v1180 = vld [vmem:[%s1178 + $0x8] sm:$0xff]
    %v1181 = vld [vmem:[%s1178 + $0x10] sm:$0xff]
    %v1182 = vld [vmem:[%s1178 + $0x18] sm:$0xff]
    %v1184 = vsel %vm129, %v1170, 0
    %v1187 = vsel %vm129, %v1171, 0
    %v1190 = vsel %vm129, %v1172, 0
    %v1193 = vsel %vm129, %v1173, 0
    %v1196 = vsel %vm129, %v1174, 0
    %v1199 = vsel %vm129, %v1175, 0
    %v1202 = vsel %vm129, %v1176, 0
    %v1205 = vsel %vm129, %v1177, 0
    %1207 = vmatprep.subr.mxu0 0.0
    %1208 = vmatpush1.msra.mxu0 0.0
    %1209 = vmatprep.subr.mxu0 0.0
    %1210 = vmatpush1.msra.mxu0 0.0
    %1211 = vmatprep.subr.mxu0 0.0
    %1212 = vmatpush1.msra.mxu0 0.0
    %1213 = vmatprep.subr.mxu0 0.0
    %1214 = vmatpush1.msra.mxu0 0.0
    %1215 = vmatprep.subr.mxu0 0.0
    %1216 = vmatpush1.msra.mxu0 0.0
    %1217 = vmatprep.subr.mxu0 0.0
    %1218 = vmatpush1.msra.mxu0 0.0
    %1219 = vmatprep.subr.mxu0 0.0
    %1220 = vmatpush1.msra.mxu0 0.0
    %1221 = vmatprep.subr.mxu0 0.0
    %1222 = vmatpush1.msra.mxu0 0.0
    %1223 = vmatprep.subr.mxu0 0.0
    %1224 = vmatpush1.msra.mxu0 0.0
    %1225 = vmatprep.subr.mxu0 0.0
    %1226 = vmatpush1.msra.mxu0 0.0
    %1227 = vmatprep.subr.mxu0 0.0
    %1228 = vmatpush1.msra.mxu0 0.0
    %1229 = vmatprep.subr.mxu0 0.0
    %1230 = vmatpush1.msra.mxu0 0.0
    %1231 = vmatprep.subr.mxu0 0.0
    %1232 = vmatpush1.msra.mxu0 %v1182
    %1233 = vmatprep.subr.mxu0 0.0
    %1234 = vmatpush1.msra.mxu0 %v1181
    %1235 = vmatprep.subr.mxu0 0.0
    %1236 = vmatpush1.msra.mxu0 %v1180
    %1237 = vmatprep.subr.mxu0 0.0
    %1238 = vmatpush1.msra.mxu0 %v1179
    %1239 = vmatprep.subr.mxu0 0.0
    %1240 = vmatpush2.msra.mxu0 0.0
    %1241 = vmatprep.subr.mxu0 0.0
    %1242 = vmatpush2.msra.mxu0 0.0
    %1243 = vmatprep.subr.mxu0 0.0
    %1244 = vmatpush2.msra.mxu0 0.0
    %1245 = vmatprep.subr.mxu0 0.0
    %1246 = vmatpush2.msra.mxu0 0.0
    %1247 = vmatprep.subr.mxu0 0.0
    %1248 = vmatpush2.msra.mxu0 0.0
    %1249 = vmatprep.subr.mxu0 0.0
    %1250 = vmatpush2.msra.mxu0 0.0
    %1251 = vmatprep.subr.mxu0 0.0
    %1252 = vmatpush2.msra.mxu0 0.0
    %1253 = vmatprep.subr.mxu0 0.0
    %1254 = vmatpush2.msra.mxu0 0.0
    %1255 = vmatprep.subr.mxu0 0.0
    %1256 = vmatpush2.msra.mxu0 0.0
    %1257 = vmatprep.subr.mxu0 0.0
    %1258 = vmatpush2.msra.mxu0 0.0
    %1259 = vmatprep.subr.mxu0 0.0
    %1260 = vmatpush2.msra.mxu0 0.0
    %1261 = vmatprep.subr.mxu0 0.0
    %1262 = vmatpush2.msra.mxu0 0.0
    %1263 = vmatprep.subr.mxu0 0.0
    %1264 = vmatpush2.msra.mxu0 0.0
    %1265 = vmatprep.subr.mxu0 0.0
    %1266 = vmatpush2.msra.mxu0 0.0
    %1267 = vmatprep.subr.mxu0 0.0
    %1268 = vmatpush2.msra.mxu0 0.0
    %1269 = vmatprep.subr.mxu0 0.0
    %1270 = vmatpush2.msra.mxu0 0.0
    %1271 = vmatprep.mubr.f32.mxu0 0.0
    %1272 = vmatmul.mubr.f32.gmra.mxu0 %v1184
    %v1273 = vpop.f32.mrf.mxu0
    %v1274 = vadd.f32 0.0, %v1273
    %v1275 = vpop.f32.mrf.mxu0
    %1276 = vmatprep.mubr.f32.mxu0 0.0
    %1277 = vmatmul.mubr.f32.gmra.mxu0 %v1187
    %v1278 = vpop.f32.mrf.mxu0
    %v1279 = vadd.f32 0.0, %v1278
    %v1280 = vpop.f32.mrf.mxu0
    %1281 = vmatprep.mubr.f32.mxu0 0.0
    %1282 = vmatmul.mubr.f32.gmra.mxu0 %v1190
    %v1283 = vpop.f32.mrf.mxu0
    %v1284 = vadd.f32 0.0, %v1283
    %v1285 = vpop.f32.mrf.mxu0
    %1286 = vmatprep.mubr.f32.mxu0 0.0
    %1287 = vmatmul.mubr.f32.gmra.mxu0 %v1193
    %v1288 = vpop.f32.mrf.mxu0
    %v1289 = vadd.f32 0.0, %v1288
    %v1290 = vpop.f32.mrf.mxu0
    %1291 = vmatprep.mubr.f32.mxu0 0.0
    %1292 = vmatmul.mubr.f32.gmra.mxu0 %v1196
    %v1293 = vpop.f32.mrf.mxu0
    %v1294 = vadd.f32 0.0, %v1293
    %v1295 = vpop.f32.mrf.mxu0
    %1296 = vmatprep.mubr.f32.mxu0 0.0
    %1297 = vmatmul.mubr.f32.gmra.mxu0 %v1199
    %v1298 = vpop.f32.mrf.mxu0
    %v1299 = vadd.f32 0.0, %v1298
    %v1300 = vpop.f32.mrf.mxu0
    %1301 = vmatprep.mubr.f32.mxu0 0.0
    %1302 = vmatmul.mubr.f32.gmra.mxu0 %v1202
    %v1303 = vpop.f32.mrf.mxu0
    %v1304 = vadd.f32 0.0, %v1303
    %v1305 = vpop.f32.mrf.mxu0
    %1306 = vmatprep.mubr.f32.mxu0 0.0
    %1307 = vmatmul.mubr.f32.gmra.mxu0 %v1205
    %v1308 = vpop.f32.mrf.mxu0
    %v1309 = vadd.f32 0.0, %v1308
    %v1310 = vpop.f32.mrf.mxu0
    %1311 = vdwg.mxu0
    %v1313 = vsel %vm129, %v1158, 0
    %v1316 = vsel %vm129, %v1159, 0
    %v1319 = vsel %vm129, %v1160, 0
    %v1322 = vsel %vm129, %v1161, 0
    %v1325 = vsel %vm129, %v1162, 0
    %v1328 = vsel %vm129, %v1163, 0
    %v1331 = vsel %vm129, %v1164, 0
    %v1334 = vsel %vm129, %v1165, 0
    %1336 = vmatprep.subr.mxu0 0.0
    %1337 = vmatpush1.msra.mxu0 0.0
    %1338 = vmatprep.subr.mxu0 0.0
    %1339 = vmatpush1.msra.mxu0 0.0
    %1340 = vmatprep.subr.mxu0 0.0
    %1341 = vmatpush1.msra.mxu0 0.0
    %1342 = vmatprep.subr.mxu0 0.0
    %1343 = vmatpush1.msra.mxu0 0.0
    %1344 = vmatprep.subr.mxu0 0.0
    %1345 = vmatpush1.msra.mxu0 0.0
    %1346 = vmatprep.subr.mxu0 0.0
    %1347 = vmatpush1.msra.mxu0 0.0
    %1348 = vmatprep.subr.mxu0 0.0
    %1349 = vmatpush1.msra.mxu0 0.0
    %1350 = vmatprep.subr.mxu0 0.0
    %1351 = vmatpush1.msra.mxu0 0.0
    %1352 = vmatprep.subr.mxu0 0.0
    %1353 = vmatpush1.msra.mxu0 0.0
    %1354 = vmatprep.subr.mxu0 0.0
    %1355 = vmatpush1.msra.mxu0 0.0
    %1356 = vmatprep.subr.mxu0 0.0
    %1357 = vmatpush1.msra.mxu0 0.0
    %1358 = vmatprep.subr.mxu0 0.0
    %1359 = vmatpush1.msra.mxu0 0.0
    %1360 = vmatprep.subr.mxu0 0.0
    %1361 = vmatpush1.msra.mxu0 %v1169
    %1362 = vmatprep.subr.mxu0 0.0
    %1363 = vmatpush1.msra.mxu0 %v1168
    %1364 = vmatprep.subr.mxu0 0.0
    %1365 = vmatpush1.msra.mxu0 %v1167
    %1366 = vmatprep.subr.mxu0 0.0
    %1367 = vmatpush1.msra.mxu0 %v1166
    %1368 = vmatprep.subr.mxu0 0.0
    %1369 = vmatpush2.msra.mxu0 0.0
    %1370 = vmatprep.subr.mxu0 0.0
    %1371 = vmatpush2.msra.mxu0 0.0
    %1372 = vmatprep.subr.mxu0 0.0
    %1373 = vmatpush2.msra.mxu0 0.0
    %1374 = vmatprep.subr.mxu0 0.0
    %1375 = vmatpush2.msra.mxu0 0.0
    %1376 = vmatprep.subr.mxu0 0.0
    %1377 = vmatpush2.msra.mxu0 0.0
    %1378 = vmatprep.subr.mxu0 0.0
    %1379 = vmatpush2.msra.mxu0 0.0
    %1380 = vmatprep.subr.mxu0 0.0
    %1381 = vmatpush2.msra.mxu0 0.0
    %1382 = vmatprep.subr.mxu0 0.0
    %1383 = vmatpush2.msra.mxu0 0.0
    %1384 = vmatprep.subr.mxu0 0.0
    %1385 = vmatpush2.msra.mxu0 0.0
    %1386 = vmatprep.subr.mxu0 0.0
    %1387 = vmatpush2.msra.mxu0 0.0
    %1388 = vmatprep.subr.mxu0 0.0
    %1389 = vmatpush2.msra.mxu0 0.0
    %1390 = vmatprep.subr.mxu0 0.0
    %1391 = vmatpush2.msra.mxu0 0.0
    %1392 = vmatprep.subr.mxu0 0.0
    %1393 = vmatpush2.msra.mxu0 0.0
    %1394 = vmatprep.subr.mxu0 0.0
    %1395 = vmatpush2.msra.mxu0 0.0
    %1396 = vmatprep.subr.mxu0 0.0
    %1397 = vmatpush2.msra.mxu0 0.0
    %1398 = vmatprep.subr.mxu0 0.0
    %1399 = vmatpush2.msra.mxu0 0.0
    %1400 = vmatprep.mubr.f32.mxu0 0.0
    %1401 = vmatmul.mubr.f32.gmra.mxu0 %v1313
    %v1402 = vpop.f32.mrf.mxu0
    %v1403 = vadd.f32 %v1274, %v1402
    %v1404 = vpop.f32.mrf.mxu0
    %1405 = vmatprep.mubr.f32.mxu0 0.0
    %1406 = vmatmul.mubr.f32.gmra.mxu0 %v1316
    %v1407 = vpop.f32.mrf.mxu0
    %v1408 = vadd.f32 %v1279, %v1407
    %v1409 = vpop.f32.mrf.mxu0
    %1410 = vmatprep.mubr.f32.mxu0 0.0
    %1411 = vmatmul.mubr.f32.gmra.mxu0 %v1319
    %v1412 = vpop.f32.mrf.mxu0
    %v1413 = vadd.f32 %v1284, %v1412
    %v1414 = vpop.f32.mrf.mxu0
    %1415 = vmatprep.mubr.f32.mxu0 0.0
    %1416 = vmatmul.mubr.f32.gmra.mxu0 %v1322
    %v1417 = vpop.f32.mrf.mxu0
    %v1418 = vadd.f32 %v1289, %v1417
    %v1419 = vpop.f32.mrf.mxu0
    %1420 = vmatprep.mubr.f32.mxu0 0.0
    %1421 = vmatmul.mubr.f32.gmra.mxu0 %v1325
    %v1422 = vpop.f32.mrf.mxu0
    %v1423 = vadd.f32 %v1294, %v1422
    %v1424 = vpop.f32.mrf.mxu0
    %1425 = vmatprep.mubr.f32.mxu0 0.0
    %1426 = vmatmul.mubr.f32.gmra.mxu0 %v1328
    %v1427 = vpop.f32.mrf.mxu0
    %v1428 = vadd.f32 %v1299, %v1427
    %v1429 = vpop.f32.mrf.mxu0
    %1430 = vmatprep.mubr.f32.mxu0 0.0
    %1431 = vmatmul.mubr.f32.gmra.mxu0 %v1331
    %v1432 = vpop.f32.mrf.mxu0
    %v1433 = vadd.f32 %v1304, %v1432
    %v1434 = vpop.f32.mrf.mxu0
    %1435 = vmatprep.mubr.f32.mxu0 0.0
    %1436 = vmatmul.mubr.f32.gmra.mxu0 %v1334
    %v1437 = vpop.f32.mrf.mxu0
    %v1438 = vadd.f32 %v1309, %v1437
    %v1439 = vpop.f32.mrf.mxu0
    %1440 = vdwg.mxu0
    %v1441 = vld [vmem:[#allocation3 + $0x9] sm:$0xff]
    %v1442 = vld [vmem:[#allocation3 + $0x11] sm:$0xff]
    %v1443 = vld [vmem:[#allocation3 + $0x19] sm:$0xff]
    %v1444 = vld [vmem:[#allocation3 + $0x21] sm:$0xff]
    %v1445 = vld [vmem:[#allocation3 + $0x29] sm:$0xff]
    %v1446 = vld [vmem:[#allocation3 + $0x31] sm:$0xff]
    %v1447 = vld [vmem:[#allocation3 + $0x39] sm:$0xff]
    %v1448 = vld [vmem:[#allocation3 + $0x41] sm:$0xff]
    %s1449 = scalar_lea.vmem %s4, 64
    %v1450 = vld [vmem:[%s1449] sm:$0xff]
    %v1451 = vld [vmem:[%s1449 + $0x8] sm:$0xff]
    %v1452 = vld [vmem:[%s1449 + $0x10] sm:$0xff]
    %v1453 = vld [vmem:[%s1449 + $0x18] sm:$0xff]
    %v1455 = vsel %vm129, %v1441, 0
    %v1458 = vsel %vm129, %v1442, 0
    %v1461 = vsel %vm129, %v1443, 0
    %v1464 = vsel %vm129, %v1444, 0
    %v1467 = vsel %vm129, %v1445, 0
    %v1470 = vsel %vm129, %v1446, 0
    %v1473 = vsel %vm129, %v1447, 0
    %v1476 = vsel %vm129, %v1448, 0
    %1478 = vmatprep.subr.mxu0 0.0
    %1479 = vmatpush1.msra.mxu0 0.0
    %1480 = vmatprep.subr.mxu0 0.0
    %1481 = vmatpush1.msra.mxu0 0.0
    %1482 = vmatprep.subr.mxu0 0.0
    %1483 = vmatpush1.msra.mxu0 0.0
    %1484 = vmatprep.subr.mxu0 0.0
    %1485 = vmatpush1.msra.mxu0 0.0
    %1486 = vmatprep.subr.mxu0 0.0
    %1487 = vmatpush1.msra.mxu0 0.0
    %1488 = vmatprep.subr.mxu0 0.0
    %1489 = vmatpush1.msra.mxu0 0.0
    %1490 = vmatprep.subr.mxu0 0.0
    %1491 = vmatpush1.msra.mxu0 0.0
    %1492 = vmatprep.subr.mxu0 0.0
    %1493 = vmatpush1.msra.mxu0 0.0
    %1494 = vmatprep.subr.mxu0 0.0
    %1495 = vmatpush1.msra.mxu0 0.0
    %1496 = vmatprep.subr.mxu0 0.0
    %1497 = vmatpush1.msra.mxu0 0.0
    %1498 = vmatprep.subr.mxu0 0.0
    %1499 = vmatpush1.msra.mxu0 0.0
    %1500 = vmatprep.subr.mxu0 0.0
    %1501 = vmatpush1.msra.mxu0 0.0
    %1502 = vmatprep.subr.mxu0 0.0
    %1503 = vmatpush1.msra.mxu0 %v1453
    %1504 = vmatprep.subr.mxu0 0.0
    %1505 = vmatpush1.msra.mxu0 %v1452
    %1506 = vmatprep.subr.mxu0 0.0
    %1507 = vmatpush1.msra.mxu0 %v1451
    %1508 = vmatprep.subr.mxu0 0.0
    %1509 = vmatpush1.msra.mxu0 %v1450
    %1510 = vmatprep.subr.mxu0 0.0
    %1511 = vmatpush2.msra.mxu0 0.0
    %1512 = vmatprep.subr.mxu0 0.0
    %1513 = vmatpush2.msra.mxu0 0.0
    %1514 = vmatprep.subr.mxu0 0.0
    %1515 = vmatpush2.msra.mxu0 0.0
    %1516 = vmatprep.subr.mxu0 0.0
    %1517 = vmatpush2.msra.mxu0 0.0
    %1518 = vmatprep.subr.mxu0 0.0
    %1519 = vmatpush2.msra.mxu0 0.0
    %1520 = vmatprep.subr.mxu0 0.0
    %1521 = vmatpush2.msra.mxu0 0.0
    %1522 = vmatprep.subr.mxu0 0.0
    %1523 = vmatpush2.msra.mxu0 0.0
    %1524 = vmatprep.subr.mxu0 0.0
    %1525 = vmatpush2.msra.mxu0 0.0
    %1526 = vmatprep.subr.mxu0 0.0
    %1527 = vmatpush2.msra.mxu0 0.0
    %1528 = vmatprep.subr.mxu0 0.0
    %1529 = vmatpush2.msra.mxu0 0.0
    %1530 = vmatprep.subr.mxu0 0.0
    %1531 = vmatpush2.msra.mxu0 0.0
    %1532 = vmatprep.subr.mxu0 0.0
    %1533 = vmatpush2.msra.mxu0 0.0
    %1534 = vmatprep.subr.mxu0 0.0
    %1535 = vmatpush2.msra.mxu0 0.0
    %1536 = vmatprep.subr.mxu0 0.0
    %1537 = vmatpush2.msra.mxu0 0.0
    %1538 = vmatprep.subr.mxu0 0.0
    %1539 = vmatpush2.msra.mxu0 0.0
    %1540 = vmatprep.subr.mxu0 0.0
    %1541 = vmatpush2.msra.mxu0 0.0
    %1542 = vmatprep.mubr.f32.mxu0 0.0
    %1543 = vmatmul.mubr.f32.gmra.mxu0 %v1455
    %v1544 = vpop.f32.mrf.mxu0
    %v1545 = vadd.f32 0.0, %v1544
    %v1546 = vpop.f32.mrf.mxu0
    %1547 = vmatprep.mubr.f32.mxu0 0.0
    %1548 = vmatmul.mubr.f32.gmra.mxu0 %v1458
    %v1549 = vpop.f32.mrf.mxu0
    %v1550 = vadd.f32 0.0, %v1549
    %v1551 = vpop.f32.mrf.mxu0
    %1552 = vmatprep.mubr.f32.mxu0 0.0
    %1553 = vmatmul.mubr.f32.gmra.mxu0 %v1461
    %v1554 = vpop.f32.mrf.mxu0
    %v1555 = vadd.f32 0.0, %v1554
    %v1556 = vpop.f32.mrf.mxu0
    %1557 = vmatprep.mubr.f32.mxu0 0.0
    %1558 = vmatmul.mubr.f32.gmra.mxu0 %v1464
    %v1559 = vpop.f32.mrf.mxu0
    %v1560 = vadd.f32 0.0, %v1559
    %v1561 = vpop.f32.mrf.mxu0
    %1562 = vmatprep.mubr.f32.mxu0 0.0
    %1563 = vmatmul.mubr.f32.gmra.mxu0 %v1467
    %v1564 = vpop.f32.mrf.mxu0
    %v1565 = vadd.f32 0.0, %v1564
    %v1566 = vpop.f32.mrf.mxu0
    %1567 = vmatprep.mubr.f32.mxu0 0.0
    %1568 = vmatmul.mubr.f32.gmra.mxu0 %v1470
    %v1569 = vpop.f32.mrf.mxu0
    %v1570 = vadd.f32 0.0, %v1569
    %v1571 = vpop.f32.mrf.mxu0
    %1572 = vmatprep.mubr.f32.mxu0 0.0
    %1573 = vmatmul.mubr.f32.gmra.mxu0 %v1473
    %v1574 = vpop.f32.mrf.mxu0
    %v1575 = vadd.f32 0.0, %v1574
    %v1576 = vpop.f32.mrf.mxu0
    %1577 = vmatprep.mubr.f32.mxu0 0.0
    %1578 = vmatmul.mubr.f32.gmra.mxu0 %v1476
    %v1579 = vpop.f32.mrf.mxu0
    %v1580 = vadd.f32 0.0, %v1579
    %v1581 = vpop.f32.mrf.mxu0
    %1582 = vdwg.mxu0
    %v1583 = vadd.f32 %v1403, %v1545
    %v1584 = vadd.f32 %v1408, %v1550
    %v1585 = vadd.f32 %v1413, %v1555
    %v1586 = vadd.f32 %v1418, %v1560
    %v1587 = vadd.f32 %v1423, %v1565
    %v1588 = vadd.f32 %v1428, %v1570
    %v1589 = vadd.f32 %v1433, %v1575
    %v1590 = vadd.f32 %v1438, %v1580
    %v1591 = vlaneseq
    %v1592 = vshrl.u32 %v1591, 7
    %v1593 = vsub.s32 0, %v1592
    %v1594 = vrot.slane %v1157, %v1593
    %v1595 = vadd.f32 %v1583, %v1594
    %v1596 = vadd.f32 %v1584, %v1594
    %v1597 = vadd.f32 %v1585, %v1594
    %v1598 = vadd.f32 %v1586, %v1594
    %v1599 = vadd.f32 %v1587, %v1594
    %v1600 = vadd.f32 %v1588, %v1594
    %v1601 = vadd.f32 %v1589, %v1594
    %v1602 = vadd.f32 %v1590, %v1594
    %v1603 = vmax.f32 %v1595, 0.0
    %v1604 = vmax.f32 %v1596, 0.0
    %v1605 = vmax.f32 %v1597, 0.0
    %v1606 = vmax.f32 %v1598, 0.0
    %v1607 = vmax.f32 %v1599, 0.0
    %v1608 = vmax.f32 %v1600, 0.0
    %v1609 = vmax.f32 %v1601, 0.0
    %v1610 = vmax.f32 %v1602, 0.0
    %v1611 = vmul.f32 %v1603, %v121
    %v1612 = vmul.f32 %v1604, %v122
    %v1613 = vmul.f32 %v1605, %v123
    %v1614 = vmul.f32 %v1606, %v124
    %v1615 = vmul.f32 %v1607, %v125
    %v1616 = vmul.f32 %v1608, %v126
    %v1617 = vmul.f32 %v1609, %v127
    %v1618 = vmul.f32 %v1610, %v128
    %1619 = vst.msk [vmem:[#allocation4 + $0x8] sm:$0xff] %vm129, %v1611
    %1620 = vst.msk [vmem:[#allocation4 + $0x10] sm:$0xff] %vm129, %v1612
    %1621 = vst.msk [vmem:[#allocation4 + $0x18] sm:$0xff] %vm129, %v1613
    %1622 = vst.msk [vmem:[#allocation4 + $0x20] sm:$0xff] %vm129, %v1614
    %1623 = vst.msk [vmem:[#allocation4 + $0x28] sm:$0xff] %vm129, %v1615
    %1624 = vst.msk [vmem:[#allocation4 + $0x30] sm:$0xff] %vm129, %v1616
    %1625 = vst.msk [vmem:[#allocation4 + $0x38] sm:$0xff] %vm129, %v1617
    %1626 = vst.msk [vmem:[#allocation4 + $0x40] sm:$0xff] %vm129, %v1618
    %v1627 = vld [vmem:[#allocation8 + $0x2] sm:$0x1]
    %v1628 = vld [vmem:[#allocation4 + $0x7] sm:$0xff]
    %v1629 = vld [vmem:[#allocation4 + $0xf] sm:$0xff]
    %v1630 = vld [vmem:[#allocation4 + $0x17] sm:$0xff]
    %v1631 = vld [vmem:[#allocation4 + $0x1f] sm:$0xff]
    %v1632 = vld [vmem:[#allocation4 + $0x27] sm:$0xff]
    %v1633 = vld [vmem:[#allocation4 + $0x2f] sm:$0xff]
    %v1634 = vld [vmem:[#allocation4 + $0x37] sm:$0xff]
    %v1635 = vld [vmem:[#allocation4 + $0x3f] sm:$0xff]
    %v1636 = vld [vmem:[#allocation5] sm:$0xff]
    %v1637 = vld [vmem:[#allocation5 + $0x8] sm:$0xff]
    %v1638 = vld [vmem:[#allocation5 + $0x10] sm:$0xff]
    %v1639 = vld [vmem:[#allocation5 + $0x18] sm:$0xff]
    %v1640 = vld [vmem:[#allocation4 + $0x8] sm:$0xff]
    %v1641 = vld [vmem:[#allocation4 + $0x10] sm:$0xff]
    %v1642 = vld [vmem:[#allocation4 + $0x18] sm:$0xff]
    %v1643 = vld [vmem:[#allocation4 + $0x20] sm:$0xff]
    %v1644 = vld [vmem:[#allocation4 + $0x28] sm:$0xff]
    %v1645 = vld [vmem:[#allocation4 + $0x30] sm:$0xff]
    %v1646 = vld [vmem:[#allocation4 + $0x38] sm:$0xff]
    %v1647 = vld [vmem:[#allocation4 + $0x40] sm:$0xff]
    %s1648 = scalar_lea.vmem [#allocation5], 32
    %v1649 = vld [vmem:[%s1648] sm:$0xff]
    %v1650 = vld [vmem:[%s1648 + $0x8] sm:$0xff]
    %v1651 = vld [vmem:[%s1648 + $0x10] sm:$0xff]
    %v1652 = vld [vmem:[%s1648 + $0x18] sm:$0xff]
    %v1654 = vsel %vm129, %v1640, 0
    %v1657 = vsel %vm129, %v1641, 0
    %v1660 = vsel %vm129, %v1642, 0
    %v1663 = vsel %vm129, %v1643, 0
    %v1666 = vsel %vm129, %v1644, 0
    %v1669 = vsel %vm129, %v1645, 0
    %v1672 = vsel %vm129, %v1646, 0
    %v1675 = vsel %vm129, %v1647, 0
    %1677 = vmatprep.subr.mxu0 0.0
    %1678 = vmatpush1.msra.mxu0 0.0
    %1679 = vmatprep.subr.mxu0 0.0
    %1680 = vmatpush1.msra.mxu0 0.0
    %1681 = vmatprep.subr.mxu0 0.0
    %1682 = vmatpush1.msra.mxu0 0.0
    %1683 = vmatprep.subr.mxu0 0.0
    %1684 = vmatpush1.msra.mxu0 0.0
    %1685 = vmatprep.subr.mxu0 0.0
    %1686 = vmatpush1.msra.mxu0 0.0
    %1687 = vmatprep.subr.mxu0 0.0
    %1688 = vmatpush1.msra.mxu0 0.0
    %1689 = vmatprep.subr.mxu0 0.0
    %1690 = vmatpush1.msra.mxu0 0.0
    %1691 = vmatprep.subr.mxu0 0.0
    %1692 = vmatpush1.msra.mxu0 0.0
    %1693 = vmatprep.subr.mxu0 0.0
    %1694 = vmatpush1.msra.mxu0 0.0
    %1695 = vmatprep.subr.mxu0 0.0
    %1696 = vmatpush1.msra.mxu0 0.0
    %1697 = vmatprep.subr.mxu0 0.0
    %1698 = vmatpush1.msra.mxu0 0.0
    %1699 = vmatprep.subr.mxu0 0.0
    %1700 = vmatpush1.msra.mxu0 0.0
    %1701 = vmatprep.subr.mxu0 0.0
    %1702 = vmatpush1.msra.mxu0 %v1652
    %1703 = vmatprep.subr.mxu0 0.0
    %1704 = vmatpush1.msra.mxu0 %v1651
    %1705 = vmatprep.subr.mxu0 0.0
    %1706 = vmatpush1.msra.mxu0 %v1650
    %1707 = vmatprep.subr.mxu0 0.0
    %1708 = vmatpush1.msra.mxu0 %v1649
    %1709 = vmatprep.subr.mxu0 0.0
    %1710 = vmatpush2.msra.mxu0 0.0
    %1711 = vmatprep.subr.mxu0 0.0
    %1712 = vmatpush2.msra.mxu0 0.0
    %1713 = vmatprep.subr.mxu0 0.0
    %1714 = vmatpush2.msra.mxu0 0.0
    %1715 = vmatprep.subr.mxu0 0.0
    %1716 = vmatpush2.msra.mxu0 0.0
    %1717 = vmatprep.subr.mxu0 0.0
    %1718 = vmatpush2.msra.mxu0 0.0
    %1719 = vmatprep.subr.mxu0 0.0
    %1720 = vmatpush2.msra.mxu0 0.0
    %1721 = vmatprep.subr.mxu0 0.0
    %1722 = vmatpush2.msra.mxu0 0.0
    %1723 = vmatprep.subr.mxu0 0.0
    %1724 = vmatpush2.msra.mxu0 0.0
    %1725 = vmatprep.subr.mxu0 0.0
    %1726 = vmatpush2.msra.mxu0 0.0
    %1727 = vmatprep.subr.mxu0 0.0
    %1728 = vmatpush2.msra.mxu0 0.0
    %1729 = vmatprep.subr.mxu0 0.0
    %1730 = vmatpush2.msra.mxu0 0.0
    %1731 = vmatprep.subr.mxu0 0.0
    %1732 = vmatpush2.msra.mxu0 0.0
    %1733 = vmatprep.subr.mxu0 0.0
    %1734 = vmatpush2.msra.mxu0 0.0
    %1735 = vmatprep.subr.mxu0 0.0
    %1736 = vmatpush2.msra.mxu0 0.0
    %1737 = vmatprep.subr.mxu0 0.0
    %1738 = vmatpush2.msra.mxu0 0.0
    %1739 = vmatprep.subr.mxu0 0.0
    %1740 = vmatpush2.msra.mxu0 0.0
    %1741 = vmatprep.mubr.f32.mxu0 0.0
    %1742 = vmatmul.mubr.f32.gmra.mxu0 %v1654
    %v1743 = vpop.f32.mrf.mxu0
    %v1744 = vadd.f32 0.0, %v1743
    %v1745 = vpop.f32.mrf.mxu0
    %1746 = vmatprep.mubr.f32.mxu0 0.0
    %1747 = vmatmul.mubr.f32.gmra.mxu0 %v1657
    %v1748 = vpop.f32.mrf.mxu0
    %v1749 = vadd.f32 0.0, %v1748
    %v1750 = vpop.f32.mrf.mxu0
    %1751 = vmatprep.mubr.f32.mxu0 0.0
    %1752 = vmatmul.mubr.f32.gmra.mxu0 %v1660
    %v1753 = vpop.f32.mrf.mxu0
    %v1754 = vadd.f32 0.0, %v1753
    %v1755 = vpop.f32.mrf.mxu0
    %1756 = vmatprep.mubr.f32.mxu0 0.0
    %1757 = vmatmul.mubr.f32.gmra.mxu0 %v1663
    %v1758 = vpop.f32.mrf.mxu0
    %v1759 = vadd.f32 0.0, %v1758
    %v1760 = vpop.f32.mrf.mxu0
    %1761 = vmatprep.mubr.f32.mxu0 0.0
    %1762 = vmatmul.mubr.f32.gmra.mxu0 %v1666
    %v1763 = vpop.f32.mrf.mxu0
    %v1764 = vadd.f32 0.0, %v1763
    %v1765 = vpop.f32.mrf.mxu0
    %1766 = vmatprep.mubr.f32.mxu0 0.0
    %1767 = vmatmul.mubr.f32.gmra.mxu0 %v1669
    %v1768 = vpop.f32.mrf.mxu0
    %v1769 = vadd.f32 0.0, %v1768
    %v1770 = vpop.f32.mrf.mxu0
    %1771 = vmatprep.mubr.f32.mxu0 0.0
    %1772 = vmatmul.mubr.f32.gmra.mxu0 %v1672
    %v1773 = vpop.f32.mrf.mxu0
    %v1774 = vadd.f32 0.0, %v1773
    %v1775 = vpop.f32.mrf.mxu0
    %1776 = vmatprep.mubr.f32.mxu0 0.0
    %1777 = vmatmul.mubr.f32.gmra.mxu0 %v1675
    %v1778 = vpop.f32.mrf.mxu0
    %v1779 = vadd.f32 0.0, %v1778
    %v1780 = vpop.f32.mrf.mxu0
    %1781 = vdwg.mxu0
    %v1783 = vsel %vm129, %v1628, 0
    %v1786 = vsel %vm129, %v1629, 0
    %v1789 = vsel %vm129, %v1630, 0
    %v1792 = vsel %vm129, %v1631, 0
    %v1795 = vsel %vm129, %v1632, 0
    %v1798 = vsel %vm129, %v1633, 0
    %v1801 = vsel %vm129, %v1634, 0
    %v1804 = vsel %vm129, %v1635, 0
    %1806 = vmatprep.subr.mxu0 0.0
    %1807 = vmatpush1.msra.mxu0 0.0
    %1808 = vmatprep.subr.mxu0 0.0
    %1809 = vmatpush1.msra.mxu0 0.0
    %1810 = vmatprep.subr.mxu0 0.0
    %1811 = vmatpush1.msra.mxu0 0.0
    %1812 = vmatprep.subr.mxu0 0.0
    %1813 = vmatpush1.msra.mxu0 0.0
    %1814 = vmatprep.subr.mxu0 0.0
    %1815 = vmatpush1.msra.mxu0 0.0
    %1816 = vmatprep.subr.mxu0 0.0
    %1817 = vmatpush1.msra.mxu0 0.0
    %1818 = vmatprep.subr.mxu0 0.0
    %1819 = vmatpush1.msra.mxu0 0.0
    %1820 = vmatprep.subr.mxu0 0.0
    %1821 = vmatpush1.msra.mxu0 0.0
    %1822 = vmatprep.subr.mxu0 0.0
    %1823 = vmatpush1.msra.mxu0 0.0
    %1824 = vmatprep.subr.mxu0 0.0
    %1825 = vmatpush1.msra.mxu0 0.0
    %1826 = vmatprep.subr.mxu0 0.0
    %1827 = vmatpush1.msra.mxu0 0.0
    %1828 = vmatprep.subr.mxu0 0.0
    %1829 = vmatpush1.msra.mxu0 0.0
    %1830 = vmatprep.subr.mxu0 0.0
    %1831 = vmatpush1.msra.mxu0 %v1639
    %1832 = vmatprep.subr.mxu0 0.0
    %1833 = vmatpush1.msra.mxu0 %v1638
    %1834 = vmatprep.subr.mxu0 0.0
    %1835 = vmatpush1.msra.mxu0 %v1637
    %1836 = vmatprep.subr.mxu0 0.0
    %1837 = vmatpush1.msra.mxu0 %v1636
    %1838 = vmatprep.subr.mxu0 0.0
    %1839 = vmatpush2.msra.mxu0 0.0
    %1840 = vmatprep.subr.mxu0 0.0
    %1841 = vmatpush2.msra.mxu0 0.0
    %1842 = vmatprep.subr.mxu0 0.0
    %1843 = vmatpush2.msra.mxu0 0.0
    %1844 = vmatprep.subr.mxu0 0.0
    %1845 = vmatpush2.msra.mxu0 0.0
    %1846 = vmatprep.subr.mxu0 0.0
    %1847 = vmatpush2.msra.mxu0 0.0
    %1848 = vmatprep.subr.mxu0 0.0
    %1849 = vmatpush2.msra.mxu0 0.0
    %1850 = vmatprep.subr.mxu0 0.0
    %1851 = vmatpush2.msra.mxu0 0.0
    %1852 = vmatprep.subr.mxu0 0.0
    %1853 = vmatpush2.msra.mxu0 0.0
    %1854 = vmatprep.subr.mxu0 0.0
    %1855 = vmatpush2.msra.mxu0 0.0
    %1856 = vmatprep.subr.mxu0 0.0
    %1857 = vmatpush2.msra.mxu0 0.0
    %1858 = vmatprep.subr.mxu0 0.0
    %1859 = vmatpush2.msra.mxu0 0.0
    %1860 = vmatprep.subr.mxu0 0.0
    %1861 = vmatpush2.msra.mxu0 0.0
    %1862 = vmatprep.subr.mxu0 0.0
    %1863 = vmatpush2.msra.mxu0 0.0
    %1864 = vmatprep.subr.mxu0 0.0
    %1865 = vmatpush2.msra.mxu0 0.0
    %1866 = vmatprep.subr.mxu0 0.0
    %1867 = vmatpush2.msra.mxu0 0.0
    %1868 = vmatprep.subr.mxu0 0.0
    %1869 = vmatpush2.msra.mxu0 0.0
    %1870 = vmatprep.mubr.f32.mxu0 0.0
    %1871 = vmatmul.mubr.f32.gmra.mxu0 %v1783
    %v1872 = vpop.f32.mrf.mxu0
    %v1873 = vadd.f32 %v1744, %v1872
    %v1874 = vpop.f32.mrf.mxu0
    %1875 = vmatprep.mubr.f32.mxu0 0.0
    %1876 = vmatmul.mubr.f32.gmra.mxu0 %v1786
    %v1877 = vpop.f32.mrf.mxu0
    %v1878 = vadd.f32 %v1749, %v1877
    %v1879 = vpop.f32.mrf.mxu0
    %1880 = vmatprep.mubr.f32.mxu0 0.0
    %1881 = vmatmul.mubr.f32.gmra.mxu0 %v1789
    %v1882 = vpop.f32.mrf.mxu0
    %v1883 = vadd.f32 %v1754, %v1882
    %v1884 = vpop.f32.mrf.mxu0
    %1885 = vmatprep.mubr.f32.mxu0 0.0
    %1886 = vmatmul.mubr.f32.gmra.mxu0 %v1792
    %v1887 = vpop.f32.mrf.mxu0
    %v1888 = vadd.f32 %v1759, %v1887
    %v1889 = vpop.f32.mrf.mxu0
    %1890 = vmatprep.mubr.f32.mxu0 0.0
    %1891 = vmatmul.mubr.f32.gmra.mxu0 %v1795
    %v1892 = vpop.f32.mrf.mxu0
    %v1893 = vadd.f32 %v1764, %v1892
    %v1894 = vpop.f32.mrf.mxu0
    %1895 = vmatprep.mubr.f32.mxu0 0.0
    %1896 = vmatmul.mubr.f32.gmra.mxu0 %v1798
    %v1897 = vpop.f32.mrf.mxu0
    %v1898 = vadd.f32 %v1769, %v1897
    %v1899 = vpop.f32.mrf.mxu0
    %1900 = vmatprep.mubr.f32.mxu0 0.0
    %1901 = vmatmul.mubr.f32.gmra.mxu0 %v1801
    %v1902 = vpop.f32.mrf.mxu0
    %v1903 = vadd.f32 %v1774, %v1902
    %v1904 = vpop.f32.mrf.mxu0
    %1905 = vmatprep.mubr.f32.mxu0 0.0
    %1906 = vmatmul.mubr.f32.gmra.mxu0 %v1804
    %v1907 = vpop.f32.mrf.mxu0
    %v1908 = vadd.f32 %v1779, %v1907
    %v1909 = vpop.f32.mrf.mxu0
    %1910 = vdwg.mxu0
    %v1911 = vld [vmem:[#allocation4 + $0x9] sm:$0xff]
    %v1912 = vld [vmem:[#allocation4 + $0x11] sm:$0xff]
    %v1913 = vld [vmem:[#allocation4 + $0x19] sm:$0xff]
    %v1914 = vld [vmem:[#allocation4 + $0x21] sm:$0xff]
    %v1915 = vld [vmem:[#allocation4 + $0x29] sm:$0xff]
    %v1916 = vld [vmem:[#allocation4 + $0x31] sm:$0xff]
    %v1917 = vld [vmem:[#allocation4 + $0x39] sm:$0xff]
    %v1918 = vld [vmem:[#allocation4 + $0x41] sm:$0xff]
    %s1919 = scalar_lea.vmem [#allocation5], 64
    %v1920 = vld [vmem:[%s1919] sm:$0xff]
    %v1921 = vld [vmem:[%s1919 + $0x8] sm:$0xff]
    %v1922 = vld [vmem:[%s1919 + $0x10] sm:$0xff]
    %v1923 = vld [vmem:[%s1919 + $0x18] sm:$0xff]
    %v1925 = vsel %vm129, %v1911, 0
    %v1928 = vsel %vm129, %v1912, 0
    %v1931 = vsel %vm129, %v1913, 0
    %v1934 = vsel %vm129, %v1914, 0
    %v1937 = vsel %vm129, %v1915, 0
    %v1940 = vsel %vm129, %v1916, 0
    %v1943 = vsel %vm129, %v1917, 0
    %v1946 = vsel %vm129, %v1918, 0
    %1948 = vmatprep.subr.mxu0 0.0
    %1949 = vmatpush1.msra.mxu0 0.0
    %1950 = vmatprep.subr.mxu0 0.0
    %1951 = vmatpush1.msra.mxu0 0.0
    %1952 = vmatprep.subr.mxu0 0.0
    %1953 = vmatpush1.msra.mxu0 0.0
    %1954 = vmatprep.subr.mxu0 0.0
    %1955 = vmatpush1.msra.mxu0 0.0
    %1956 = vmatprep.subr.mxu0 0.0
    %1957 = vmatpush1.msra.mxu0 0.0
    %1958 = vmatprep.subr.mxu0 0.0
    %1959 = vmatpush1.msra.mxu0 0.0
    %1960 = vmatprep.subr.mxu0 0.0
    %1961 = vmatpush1.msra.mxu0 0.0
    %1962 = vmatprep.subr.mxu0 0.0
    %1963 = vmatpush1.msra.mxu0 0.0
    %1964 = vmatprep.subr.mxu0 0.0
    %1965 = vmatpush1.msra.mxu0 0.0
    %1966 = vmatprep.subr.mxu0 0.0
    %1967 = vmatpush1.msra.mxu0 0.0
    %1968 = vmatprep.subr.mxu0 0.0
    %1969 = vmatpush1.msra.mxu0 0.0
    %1970 = vmatprep.subr.mxu0 0.0
    %1971 = vmatpush1.msra.mxu0 0.0
    %1972 = vmatprep.subr.mxu0 0.0
    %1973 = vmatpush1.msra.mxu0 %v1923
    %1974 = vmatprep.subr.mxu0 0.0
    %1975 = vmatpush1.msra.mxu0 %v1922
    %1976 = vmatprep.subr.mxu0 0.0
    %1977 = vmatpush1.msra.mxu0 %v1921
    %1978 = vmatprep.subr.mxu0 0.0
    %1979 = vmatpush1.msra.mxu0 %v1920
    %1980 = vmatprep.subr.mxu0 0.0
    %1981 = vmatpush2.msra.mxu0 0.0
    %1982 = vmatprep.subr.mxu0 0.0
    %1983 = vmatpush2.msra.mxu0 0.0
    %1984 = vmatprep.subr.mxu0 0.0
    %1985 = vmatpush2.msra.mxu0 0.0
    %1986 = vmatprep.subr.mxu0 0.0
    %1987 = vmatpush2.msra.mxu0 0.0
    %1988 = vmatprep.subr.mxu0 0.0
    %1989 = vmatpush2.msra.mxu0 0.0
    %1990 = vmatprep.subr.mxu0 0.0
    %1991 = vmatpush2.msra.mxu0 0.0
    %1992 = vmatprep.subr.mxu0 0.0
    %1993 = vmatpush2.msra.mxu0 0.0
    %1994 = vmatprep.subr.mxu0 0.0
    %1995 = vmatpush2.msra.mxu0 0.0
    %1996 = vmatprep.subr.mxu0 0.0
    %1997 = vmatpush2.msra.mxu0 0.0
    %1998 = vmatprep.subr.mxu0 0.0
    %1999 = vmatpush2.msra.mxu0 0.0
    %2000 = vmatprep.subr.mxu0 0.0
    %2001 = vmatpush2.msra.mxu0 0.0
    %2002 = vmatprep.subr.mxu0 0.0
    %2003 = vmatpush2.msra.mxu0 0.0
    %2004 = vmatprep.subr.mxu0 0.0
    %2005 = vmatpush2.msra.mxu0 0.0
    %2006 = vmatprep.subr.mxu0 0.0
    %2007 = vmatpush2.msra.mxu0 0.0
    %2008 = vmatprep.subr.mxu0 0.0
    %2009 = vmatpush2.msra.mxu0 0.0
    %2010 = vmatprep.subr.mxu0 0.0
    %2011 = vmatpush2.msra.mxu0 0.0
    %2012 = vmatprep.mubr.f32.mxu0 0.0
    %2013 = vmatmul.mubr.f32.gmra.mxu0 %v1925
    %v2014 = vpop.f32.mrf.mxu0
    %v2015 = vadd.f32 0.0, %v2014
    %v2016 = vpop.f32.mrf.mxu0
    %2017 = vmatprep.mubr.f32.mxu0 0.0
    %2018 = vmatmul.mubr.f32.gmra.mxu0 %v1928
    %v2019 = vpop.f32.mrf.mxu0
    %v2020 = vadd.f32 0.0, %v2019
    %v2021 = vpop.f32.mrf.mxu0
    %2022 = vmatprep.mubr.f32.mxu0 0.0
    %2023 = vmatmul.mubr.f32.gmra.mxu0 %v1931
    %v2024 = vpop.f32.mrf.mxu0
    %v2025 = vadd.f32 0.0, %v2024
    %v2026 = vpop.f32.mrf.mxu0
    %2027 = vmatprep.mubr.f32.mxu0 0.0
    %2028 = vmatmul.mubr.f32.gmra.mxu0 %v1934
    %v2029 = vpop.f32.mrf.mxu0
    %v2030 = vadd.f32 0.0, %v2029
    %v2031 = vpop.f32.mrf.mxu0
    %2032 = vmatprep.mubr.f32.mxu0 0.0
    %2033 = vmatmul.mubr.f32.gmra.mxu0 %v1937
    %v2034 = vpop.f32.mrf.mxu0
    %v2035 = vadd.f32 0.0, %v2034
    %v2036 = vpop.f32.mrf.mxu0
    %2037 = vmatprep.mubr.f32.mxu0 0.0
    %2038 = vmatmul.mubr.f32.gmra.mxu0 %v1940
    %v2039 = vpop.f32.mrf.mxu0
    %v2040 = vadd.f32 0.0, %v2039
    %v2041 = vpop.f32.mrf.mxu0
    %2042 = vmatprep.mubr.f32.mxu0 0.0
    %2043 = vmatmul.mubr.f32.gmra.mxu0 %v1943
    %v2044 = vpop.f32.mrf.mxu0
    %v2045 = vadd.f32 0.0, %v2044
    %v2046 = vpop.f32.mrf.mxu0
    %2047 = vmatprep.mubr.f32.mxu0 0.0
    %2048 = vmatmul.mubr.f32.gmra.mxu0 %v1946
    %v2049 = vpop.f32.mrf.mxu0
    %v2050 = vadd.f32 0.0, %v2049
    %v2051 = vpop.f32.mrf.mxu0
    %2052 = vdwg.mxu0
    %v2053 = vadd.f32 %v1873, %v2015
    %v2054 = vadd.f32 %v1878, %v2020
    %v2055 = vadd.f32 %v1883, %v2025
    %v2056 = vadd.f32 %v1888, %v2030
    %v2057 = vadd.f32 %v1893, %v2035
    %v2058 = vadd.f32 %v1898, %v2040
    %v2059 = vadd.f32 %v1903, %v2045
    %v2060 = vadd.f32 %v1908, %v2050
    %v2061 = vlaneseq
    %v2062 = vshrl.u32 %v2061, 7
    %v2063 = vsub.s32 0, %v2062
    %v2064 = vrot.slane %v1627, %v2063
    %v2065 = vadd.f32 %v2053, %v2064
    %v2066 = vadd.f32 %v2054, %v2064
    %v2067 = vadd.f32 %v2055, %v2064
    %v2068 = vadd.f32 %v2056, %v2064
    %v2069 = vadd.f32 %v2057, %v2064
    %v2070 = vadd.f32 %v2058, %v2064
    %v2071 = vadd.f32 %v2059, %v2064
    %v2072 = vadd.f32 %v2060, %v2064
    %v2073 = vmax.f32 %v2065, 0.0
    %v2074 = vmax.f32 %v2066, 0.0
    %v2075 = vmax.f32 %v2067, 0.0
    %v2076 = vmax.f32 %v2068, 0.0
    %v2077 = vmax.f32 %v2069, 0.0
    %v2078 = vmax.f32 %v2070, 0.0
    %v2079 = vmax.f32 %v2071, 0.0
    %v2080 = vmax.f32 %v2072, 0.0
    %v2081 = vmul.f32 %v2073, %v121
    %v2082 = vmul.f32 %v2074, %v122
    %v2083 = vmul.f32 %v2075, %v123
    %v2084 = vmul.f32 %v2076, %v124
    %v2085 = vmul.f32 %v2077, %v125
    %v2086 = vmul.f32 %v2078, %v126
    %v2087 = vmul.f32 %v2079, %v127
    %v2088 = vmul.f32 %v2080, %v128
    %v2089 = vld [vmem:[%s6] sm:$0xff]
    %v2090 = vld [vmem:[%s6 + $0x8] sm:$0xff]
    %v2091 = vld [vmem:[%s6 + $0x10] sm:$0xff]
    %v2092 = vld [vmem:[%s6 + $0x18] sm:$0xff]
    %v2093 = vld [vmem:[#allocation8 + $0x3] sm:$0x1]
    %v2094 = vlaneseq
    %v2095 = vshrl.u32 %v2094, 7
    %v2096 = vsub.s32 0, %v2095
    %v2097 = vrot.slane %v2093, %v2096
    %v2099 = vsel %vm129, %v2081, 0
    %v2102 = vsel %vm129, %v2082, 0
    %v2105 = vsel %vm129, %v2083, 0
    %v2108 = vsel %vm129, %v2084, 0
    %v2111 = vsel %vm129, %v2085, 0
    %v2114 = vsel %vm129, %v2086, 0
    %v2117 = vsel %vm129, %v2087, 0
    %v2120 = vsel %vm129, %v2088, 0
    %2122 = vmatprep.subr.mxu0 0.0
    %2123 = vmatpush1.msra.mxu0 0.0
    %2124 = vmatprep.subr.mxu0 0.0
    %2125 = vmatpush1.msra.mxu0 0.0
    %2126 = vmatprep.subr.mxu0 0.0
    %2127 = vmatpush1.msra.mxu0 0.0
    %2128 = vmatprep.subr.mxu0 0.0
    %2129 = vmatpush1.msra.mxu0 0.0
    %2130 = vmatprep.subr.mxu0 0.0
    %2131 = vmatpush1.msra.mxu0 0.0
    %2132 = vmatprep.subr.mxu0 0.0
    %2133 = vmatpush1.msra.mxu0 0.0
    %2134 = vmatprep.subr.mxu0 0.0
    %2135 = vmatpush1.msra.mxu0 0.0
    %2136 = vmatprep.subr.mxu0 0.0
    %2137 = vmatpush1.msra.mxu0 0.0
    %2138 = vmatprep.subr.mxu0 0.0
    %2139 = vmatpush1.msra.mxu0 0.0
    %2140 = vmatprep.subr.mxu0 0.0
    %2141 = vmatpush1.msra.mxu0 0.0
    %2142 = vmatprep.subr.mxu0 0.0
    %2143 = vmatpush1.msra.mxu0 0.0
    %2144 = vmatprep.subr.mxu0 0.0
    %2145 = vmatpush1.msra.mxu0 0.0
    %2146 = vmatprep.subr.mxu0 0.0
    %2147 = vmatpush1.msra.mxu0 %v2092
    %2148 = vmatprep.subr.mxu0 0.0
    %2149 = vmatpush1.msra.mxu0 %v2091
    %2150 = vmatprep.subr.mxu0 0.0
    %2151 = vmatpush1.msra.mxu0 %v2090
    %2152 = vmatprep.subr.mxu0 0.0
    %2153 = vmatpush1.msra.mxu0 %v2089
    %2154 = vmatprep.subr.mxu0 0.0
    %2155 = vmatpush2.msra.mxu0 0.0
    %2156 = vmatprep.subr.mxu0 0.0
    %2157 = vmatpush2.msra.mxu0 0.0
    %2158 = vmatprep.subr.mxu0 0.0
    %2159 = vmatpush2.msra.mxu0 0.0
    %2160 = vmatprep.subr.mxu0 0.0
    %2161 = vmatpush2.msra.mxu0 0.0
    %2162 = vmatprep.subr.mxu0 0.0
    %2163 = vmatpush2.msra.mxu0 0.0
    %2164 = vmatprep.subr.mxu0 0.0
    %2165 = vmatpush2.msra.mxu0 0.0
    %2166 = vmatprep.subr.mxu0 0.0
    %2167 = vmatpush2.msra.mxu0 0.0
    %2168 = vmatprep.subr.mxu0 0.0
    %2169 = vmatpush2.msra.mxu0 0.0
    %2170 = vmatprep.subr.mxu0 0.0
    %2171 = vmatpush2.msra.mxu0 0.0
    %2172 = vmatprep.subr.mxu0 0.0
    %2173 = vmatpush2.msra.mxu0 0.0
    %2174 = vmatprep.subr.mxu0 0.0
    %2175 = vmatpush2.msra.mxu0 0.0
    %2176 = vmatprep.subr.mxu0 0.0
    %2177 = vmatpush2.msra.mxu0 0.0
    %2178 = vmatprep.subr.mxu0 0.0
    %2179 = vmatpush2.msra.mxu0 0.0
    %2180 = vmatprep.subr.mxu0 0.0
    %2181 = vmatpush2.msra.mxu0 0.0
    %2182 = vmatprep.subr.mxu0 0.0
    %2183 = vmatpush2.msra.mxu0 0.0
    %2184 = vmatprep.subr.mxu0 0.0
    %2185 = vmatpush2.msra.mxu0 0.0
    %2186 = vmatprep.mubr.f32.mxu0 0.0
    %2187 = vmatmul.mubr.f32.gmra.mxu0 %v2099
    %v2188 = vpop.f32.mrf.mxu0
    %v2189 = vadd.f32 %v2097, %v2188
    %v2190 = vpop.f32.mrf.mxu0
    %2191 = vmatprep.mubr.f32.mxu0 0.0
    %2192 = vmatmul.mubr.f32.gmra.mxu0 %v2102
    %v2193 = vpop.f32.mrf.mxu0
    %v2194 = vadd.f32 %v2097, %v2193
    %v2195 = vpop.f32.mrf.mxu0
    %2196 = vmatprep.mubr.f32.mxu0 0.0
    %2197 = vmatmul.mubr.f32.gmra.mxu0 %v2105
    %v2198 = vpop.f32.mrf.mxu0
    %v2199 = vadd.f32 %v2097, %v2198
    %v2200 = vpop.f32.mrf.mxu0
    %2201 = vmatprep.mubr.f32.mxu0 0.0
    %2202 = vmatmul.mubr.f32.gmra.mxu0 %v2108
    %v2203 = vpop.f32.mrf.mxu0
    %v2204 = vadd.f32 %v2097, %v2203
    %v2205 = vpop.f32.mrf.mxu0
    %2206 = vmatprep.mubr.f32.mxu0 0.0
    %2207 = vmatmul.mubr.f32.gmra.mxu0 %v2111
    %v2208 = vpop.f32.mrf.mxu0
    %v2209 = vadd.f32 %v2097, %v2208
    %v2210 = vpop.f32.mrf.mxu0
    %2211 = vmatprep.mubr.f32.mxu0 0.0
    %2212 = vmatmul.mubr.f32.gmra.mxu0 %v2114
    %v2213 = vpop.f32.mrf.mxu0
    %v2214 = vadd.f32 %v2097, %v2213
    %v2215 = vpop.f32.mrf.mxu0
    %2216 = vmatprep.mubr.f32.mxu0 0.0
    %2217 = vmatmul.mubr.f32.gmra.mxu0 %v2117
    %v2218 = vpop.f32.mrf.mxu0
    %v2219 = vadd.f32 %v2097, %v2218
    %v2220 = vpop.f32.mrf.mxu0
    %2221 = vmatprep.mubr.f32.mxu0 0.0
    %2222 = vmatmul.mubr.f32.gmra.mxu0 %v2120
    %v2223 = vpop.f32.mrf.mxu0
    %v2224 = vadd.f32 %v2097, %v2223
    %v2225 = vpop.f32.mrf.mxu0
    %2226 = vdwg.mxu0
    %v2227 = vmax.f32 %v2189, 0.0
    %v2228 = vmax.f32 %v2194, 0.0
    %v2229 = vmax.f32 %v2199, 0.0
    %v2230 = vmax.f32 %v2204, 0.0
    %v2231 = vmax.f32 %v2209, 0.0
    %v2232 = vmax.f32 %v2214, 0.0
    %v2233 = vmax.f32 %v2219, 0.0
    %v2234 = vmax.f32 %v2224, 0.0
    %v2235 = vand.u32 %v145, 31
    %v2236 = vmul.u32 %v57, 32
    %vm2237 = vcmp.ge.s32.totalorder %v145, %v2236
    %v2238 = vadd.s32 %v57, 1
    %v2239 = vmul.u32 %v2238, 32
    %vm2240 = vcmp.lt.s32.totalorder %v145, %v2239
    %vm2241 = vmand %vm2237, %vm2240
    %vm2242 = vcmp.ge.s32.totalorder %v2235, 7
    %vm2243 = vmand %vm2241, %vm2242
    %vm2244 = vcmp.lt.s32.totalorder %v2235, 24
    %vm2245 = vmand %vm2243, %vm2244
    %v2246 = vsel %vm2245, 1, 0
    %v2247 = vcvt.s32.f32 %v2246
    %vm2248 = vcmask 523264
    %v2250 = vsel %vm2248, %v2247, 0
    %2252 = vmatprep.subr.mxu0 0.0
    %2253 = vmatpush1.msra.mxu0 0.0
    %2254 = vmatprep.subr.mxu0 0.0
    %2255 = vmatpush1.msra.mxu0 0.0
    %2256 = vmatprep.subr.mxu0 0.0
    %2257 = vmatpush1.msra.mxu0 0.0
    %2258 = vmatprep.subr.mxu0 0.0
    %2259 = vmatpush1.msra.mxu0 0.0
    %2260 = vmatprep.subr.mxu0 0.0
    %2261 = vmatpush1.msra.mxu0 0.0
    %2262 = vmatprep.subr.mxu0 0.0
    %2263 = vmatpush1.msra.mxu0 0.0
    %2264 = vmatprep.subr.mxu0 0.0
    %2265 = vmatpush1.msra.mxu0 0.0
    %2266 = vmatprep.subr.mxu0 0.0
    %2267 = vmatpush1.msra.mxu0 0.0
    %2268 = vmatprep.subr.mxu0 0.0
    %2269 = vmatpush1.msra.mxu0 %v2234
    %2270 = vmatprep.subr.mxu0 0.0
    %2271 = vmatpush1.msra.mxu0 %v2233
    %2272 = vmatprep.subr.mxu0 0.0
    %2273 = vmatpush1.msra.mxu0 %v2232
    %2274 = vmatprep.subr.mxu0 0.0
    %2275 = vmatpush1.msra.mxu0 %v2231
    %2276 = vmatprep.subr.mxu0 0.0
    %2277 = vmatpush1.msra.mxu0 %v2230
    %2278 = vmatprep.subr.mxu0 0.0
    %2279 = vmatpush1.msra.mxu0 %v2229
    %2280 = vmatprep.subr.mxu0 0.0
    %2281 = vmatpush1.msra.mxu0 %v2228
    %2282 = vmatprep.subr.mxu0 0.0
    %2283 = vmatpush1.msra.mxu0 %v2227
    %2284 = vmatprep.subr.mxu0 0.0
    %2285 = vmatpush2.msra.mxu0 0.0
    %2286 = vmatprep.subr.mxu0 0.0
    %2287 = vmatpush2.msra.mxu0 0.0
    %2288 = vmatprep.subr.mxu0 0.0
    %2289 = vmatpush2.msra.mxu0 0.0
    %2290 = vmatprep.subr.mxu0 0.0
    %2291 = vmatpush2.msra.mxu0 0.0
    %2292 = vmatprep.subr.mxu0 0.0
    %2293 = vmatpush2.msra.mxu0 0.0
    %2294 = vmatprep.subr.mxu0 0.0
    %2295 = vmatpush2.msra.mxu0 0.0
    %2296 = vmatprep.subr.mxu0 0.0
    %2297 = vmatpush2.msra.mxu0 0.0
    %2298 = vmatprep.subr.mxu0 0.0
    %2299 = vmatpush2.msra.mxu0 0.0
    %2300 = vmatprep.subr.mxu0 0.0
    %2301 = vmatpush2.msra.mxu0 0.0
    %2302 = vmatprep.subr.mxu0 0.0
    %2303 = vmatpush2.msra.mxu0 0.0
    %2304 = vmatprep.subr.mxu0 0.0
    %2305 = vmatpush2.msra.mxu0 0.0
    %2306 = vmatprep.subr.mxu0 0.0
    %2307 = vmatpush2.msra.mxu0 0.0
    %2308 = vmatprep.subr.mxu0 0.0
    %2309 = vmatpush2.msra.mxu0 0.0
    %2310 = vmatprep.subr.mxu0 0.0
    %2311 = vmatpush2.msra.mxu0 0.0
    %2312 = vmatprep.subr.mxu0 0.0
    %2313 = vmatpush2.msra.mxu0 0.0
    %2314 = vmatprep.subr.mxu0 0.0
    %2315 = vmatpush2.msra.mxu0 0.0
    %2316 = vmatprep.mubr.f32.mxu0 0.0
    %2317 = vmatmul.mubr.f32.gmra.mxu0 %v2250
    %v2318 = vpop.f32.mrf.mxu0
    %v2319 = vadd.f32 0.0, %v2318
    %v2320 = vpop.f32.mrf.mxu0
    %2321 = vdwg.mxu0
    %v2322 = vmul.f32 %v2319, 0.05882353
    %vm2323 = vcmask 58368
    %v2324 = vsel %vm2323, %v2322, -inf
    %2325 = vmax.xlane.f32.xlu0 %v2324
    %v2326 = vpop.xlane.xlu0 %2325
    %v2327 = vsub.f32 %v2322, %v2326
    %v2328 = vmul.f32 %v2327, 1.442695
    %v2329 = vpow.pop %v2328
    %v2330 = vsel %vm2323, %v2329, 0.0
    %2331 = vadd.xlane.f32.xlu0 %v2330
    %v2332 = vpop.xlane.xlu0 %2331
    %v2333 = vlog2.pop %v2332
    %v2334 = vmul.f32 %v2333, 0.6931472
    %v2335 = vsub.f32 %v2327, %v2334
    %2336 = vst.msk [vmem:[#allocation10] sm:$0x3] %vm2323, %v2335
    // Predicated region
    $region42: #{tpu_custom_call.1} parent=1 // pred_check
      _
    $region43: #{tpu_custom_call.1} parent=1 // pred_check_branch
      %2338 = sbr.rel (0) target = $region45
    $region44: #{tpu_custom_call.1} parent=1 // pred_region
      %s2340 = ssub.s32 32, 32
      %2341 = vsyncadd [#allocation7], %s2340
      %s2343 = sshll.u32 [#allocation10], 4
      %s2344 = int_to_ptr.vmem [resolvable:$true] %s2343
      %2346 = dma.vmem_to_hbm [thread:$0]  %s2344, 32, %s8, [#allocation7]
    $region45: #{tpu_custom_call.1} parent=1 // pred_fallthru
      _
    // Predicated region
    $region46: #{tpu_custom_call.1} parent=1 // pred_check
      _
    $region47: #{tpu_custom_call.1} parent=1 // pred_check_branch
      %2348 = sbr.rel (0) target = $region49
    $region48: #{tpu_custom_call.1} parent=1 // pred_region
      %2349 = dma.done [#allocation7], 32
    $region49: #{tpu_custom_call.1} parent=1 // pred_fallthru
      _
    %2350 = vsyncpa [#allocation6], 1
    %2351 = vsyncpa [#allocation9], 1
    %2352 = vsyncpa [#allocation7], 1

</llo_original>
